<compile_context>
chip_gen: v7x
topology: tpu7x:2x2x1
jax: 0.10.0
libtpu: 0.0.40
codegen_flags: <defaults>
</compile_context>

<pallas_src>
import functools
import numpy as np
import jax
import jax.numpy as jnp
from jax import lax
from jax.experimental import pallas as pl
from jax.experimental.pallas import tpu as pltpu

PAD_ID = 0
LANE = 128


def _round_up(x, m):
    return (x + m - 1) // m * m


# ----------------------------- Pallas kernel --------------------------------

def _bilm_fused_kernel(x_ref, wx_ref, wh_ref, wd_ref, tgt_ref,
                       logp_ref, loss_ref, xg_ref, hs_ref, *, B, T, H, V):
    """Fused bidirectional LSTM + decoders + summed CE loss.

    x_ref   : (N, 128)      time-major rows [x_fwd(48) | x_bwd(48) | 1 | 0-pad]
    wx_ref  : (128, 8H)     fused input-projection weights (bias row at col 2*Din)
    wh_ref  : (2H, 8H)      block-diagonal recurrent weights (both directions)
    wd_ref  : (2H+1, 2Vp)   block-diagonal decoder weights, bias folded in last row
    tgt_ref : (N, 2) int32  [next-word targets | reversed prev-word targets], -1 ignored
    logp_ref: (N, 2Vp)      [logp_fwd | logp_bwd(reversed time)]  (lane-dense store)
    loss_ref: (1, 1)        summed CE over both directions
    xg_ref  : (N, 8H)       scratch: hoisted input-projection gates
    hs_ref  : (N, 2H+1)     scratch: hidden states [h_f | h_b | 1]
    """
    N = B * T
    Vp = wd_ref.shape[1] // 2

    # Hoisted input projection: one MXU op covers both directions, all T steps,
    # with the (b_ih + b_hh) biases folded in via the ones column of x.
    xg_ref[...] = jnp.dot(x_ref[...], wx_ref[...],
                          preferred_element_type=jnp.float32)            # (N, 8H)
    wh = wh_ref[...]                                                     # (2H, 8H)

    # Ones column for the decoder-bias fold (written once).
    hs_ref[:, 2 * H:2 * H + 1] = jnp.ones((N, 1), jnp.float32)

    # Recurrence: one (B,2H)x(2H,8H) matmul per step drives BOTH directions.
    # Gate columns are interleaved [i_f,i_b | f_f,f_b | g_f,g_b | o_f,o_b] so each
    # nonlinearity / state update acts on one 64-lane group shared by both dirs.
    # TODO(synk): switch to lax.fori_loop(..., unroll=True) if T grows beyond ~16.
    h = jnp.zeros((B, 2 * H), jnp.float32)
    c = jnp.zeros((B, 2 * H), jnp.float32)
    for t in range(T):
        gates = xg_ref[t * B:(t + 1) * B, :] + jnp.dot(
            h, wh, preferred_element_type=jnp.float32)                   # (B, 8H)
        i_g = jax.nn.sigmoid(gates[:, 0:2 * H])
        f_g = jax.nn.sigmoid(gates[:, 2 * H:4 * H])
        g_g = jnp.tanh(gates[:, 4 * H:6 * H])
        o_g = jax.nn.sigmoid(gates[:, 6 * H:8 * H])
        c = f_g * c + i_g * g_g
        h = o_g * jnp.tanh(c)
        hs_ref[t * B:(t + 1) * B, 0:2 * H] = h

    # Decoders: one matmul, block-diagonal weights, bias via the ones column.
    h_dec = hs_ref[...]                                                  # (N, 2H+1)
    scores = jnp.dot(h_dec, wd_ref[...],
                     preferred_element_type=jnp.float32)                 # (N, 2Vp)

    col = lax.broadcasted_iota(jnp.int32, (N, Vp), 1)
    neg_big = jnp.float32(-1e30)

    def log_softmax(s):
        s = jnp.where(col < V, s, neg_big)          # mask vocab-padding columns
        m = jnp.max(s, axis=-1, keepdims=True)
        lse = jnp.log(jnp.sum(jnp.exp(s - m), axis=-1, keepdims=True)) + m
        return s - lse

    lp_f = log_softmax(scores[:, :Vp])
    lp_b = log_softmax(scores[:, Vp:])
    logp_ref[...] = jnp.concatenate([lp_f, lp_b], axis=-1)               # lane-dense

    # CrossEntropy(sum, ignore_index=-1): col >= 0 never equals -1.
    tgt = tgt_ref[...]                                                   # (N, 2)
    picked_f = jnp.where(col == tgt[:, 0:1], lp_f, 0.0)
    picked_b = jnp.where(col == tgt[:, 1:2], lp_b, 0.0)
    loss_ref[...] = (-(jnp.sum(picked_f) + jnp.sum(picked_b))).reshape(1, 1)


# -------------------- one-time parameter preparation ------------------------

def prepare_params(raw):
    """Hoisted out of the per-call forward: repack PyTorch-layout weights into the
    fused / interleaved matrices consumed by the kernel (done once at load time)."""
    w_ih_f, w_hh_f, b_ih_f, b_hh_f = [np.asarray(a, np.float32) for a in raw['lstm_forward']]
    w_ih_b, w_hh_b, b_ih_b, b_hh_b = [np.asarray(a, np.float32) for a in raw['lstm_backward']]
    H = w_hh_f.shape[1]
    Din = w_ih_f.shape[1]
    dec_w = [np.asarray(raw['dec_forward_w'], np.float32),
             np.asarray(raw['dec_backward_w'], np.float32)]
    dec_b = [np.asarray(raw['dec_forward_b'], np.float32),
             np.asarray(raw['dec_backward_b'], np.float32)]
    V = dec_w[0].shape[0]
    Vp = _round_up(V, LANE)
    assert 2 * Din + 1 <= LANE, "combined input + bias column must fit in 128 lanes"

    def gate_cols(g, d):  # interleaved gate layout: [i_f,i_b,f_f,f_b,g_f,g_b,o_f,o_b]
        s = 2 * H * g + H * d
        return slice(s, s + H)

    w_ih = [w_ih_f, w_ih_b]
    w_hh = [w_hh_f, w_hh_b]
    bias = [b_ih_f + b_hh_f, b_ih_b + b_hh_b]

    w_x = np.zeros((LANE, 8 * H), np.float32)        # (128, 256)
    w_h = np.zeros((2 * H, 8 * H), np.float32)       # (64, 256)
    for g in range(4):
        for d in range(2):
            w_x[d * Din:(d + 1) * Din, gate_cols(g, d)] = w_ih[d][g * H:(g + 1) * H, :].T
            w_x[2 * Din, gate_cols(g, d)] = bias[d][g * H:(g + 1) * H]
            w_h[d * H:(d + 1) * H, gate_cols(g, d)] = w_hh[d][g * H:(g + 1) * H, :].T

    w_dec = np.zeros((2 * H + 1, 2 * Vp), np.float32)  # (65, 256)
    for d in range(2):
        w_dec[d * H:(d + 1) * H, d * Vp:d * Vp + V] = dec_w[d].T
        w_dec[2 * H, d * Vp:d * Vp + V] = dec_b[d]     # bias row (ones column in h)

    return {
        'word_emb': raw['word_emb'], 'lemma_emb': raw['lemma_emb'],
        'upos_emb': raw['upos_emb'], 'xpos_emb': raw['xpos_emb'],
        'ufeats_emb': list(raw['ufeats_emb']),
        'w_x_comb': jnp.asarray(w_x),
        'w_hh_comb': jnp.asarray(w_h),
        'w_dec_comb': jnp.asarray(w_dec),
    }


# ------------------------------- glue (JAX) ----------------------------------

def reverse_padded_sequence(x, sentlens):
    """Reverse each sequence's first sentlens[b] positions (batch_first=True)."""
    T = x.shape[1]
    t = jnp.arange(T)[None, :]
    lens = jnp.asarray(sentlens)[:, None]
    idx = jnp.where(t < lens, lens - 1 - t, t)                  # (B, T)
    if x.ndim == 2:
        return jnp.take_along_axis(x, idx, axis=1)
    return jnp.take_along_axis(x, idx.reshape(idx.shape + (1,) * (x.ndim - 2)), axis=1)


def lstm_bilm_forward(params, word, upos, xpos, ufeats, lemma,
                      next_word, prev_word, sentlens, n_words, *, vocab_size):
    # Embedding lookups (glue). pretrain / char branches disabled in this config.
    inputs = [params['word_emb'][word], params['lemma_emb'][lemma]]
    pos_emb = params['upos_emb'][upos] + params['xpos_emb'][xpos]
    feats_emb = 0
    for i in range(ufeats.shape[-1]):
        feats_emb = feats_emb + params['ufeats_emb'][i][ufeats[:, :, i]]
    inputs += [pos_emb, feats_emb]
    x = jnp.concatenate(inputs, axis=-1).astype(jnp.float32)    # (B, T, Din)
    B, T, Din = x.shape
    N = B * T
    H = params['w_hh_comb'].shape[0] // 2
    V = vocab_size
    Vp = _round_up(V, LANE)
    assert 2 * Din + 1 <= LANE

    # worddrop / drop are identity in eval mode (p = 0).
    x_rev = reverse_padded_sequence(x, sentlens)

    # time-major [x_fwd | x_bwd | 1 | 0-pad] rows for the hoisted input projection
    x_f = jnp.transpose(x, (1, 0, 2)).reshape(N, Din)
    x_b = jnp.transpose(x_rev, (1, 0, 2)).reshape(N, Din)
    x_comb = jnp.concatenate(
        [x_f, x_b, jnp.ones((N, 1), jnp.float32),
         jnp.zeros((N, LANE - 2 * Din - 1), jnp.float32)], axis=-1)      # (N, 128)

    # CE(sum) is invariant to the per-sequence time permutation, so reverse the
    # backward TARGETS instead of un-reversing the backward hidden states.
    next_t = jnp.where(next_word == PAD_ID, -1, next_word)
    prev_t = jnp.where(prev_word == PAD_ID, -1, prev_word)
    prev_t_rev = reverse_padded_sequence(prev_t, sentlens)
    tgt = jnp.stack([jnp.transpose(next_t).reshape(N),
                     jnp.transpose(prev_t_rev).reshape(N)], axis=-1).astype(jnp.int32)

    logp_all, loss_sum = pl.pallas_call(
        functools.partial(_bilm_fused_kernel, B=B, T=T, H=H, V=V),
        out_shape=(jax.ShapeDtypeStruct((N, 2 * Vp), jnp.float32),
                   jax.ShapeDtypeStruct((1, 1), jnp.float32)),
        in_specs=[pl.BlockSpec(memory_space=pltpu.MemorySpace.VMEM)] * 5,
        out_specs=(pl.BlockSpec(memory_space=pltpu.MemorySpace.VMEM),
                   pl.BlockSpec(memory_space=pltpu.MemorySpace.VMEM)),
        scratch_shapes=[pltpu.VMEM((N, 8 * H), jnp.float32),
                        pltpu.VMEM((N, 2 * H + 1), jnp.float32)],
    )(x_comb, params['w_x_comb'], params['w_hh_comb'], params['w_dec_comb'], tgt)

    # forward logp in original order; backward logp un-reversed in the wrapper
    logp_f = jnp.transpose(logp_all[:, :V].reshape(T, B, V), (1, 0, 2))
    logp_b = reverse_padded_sequence(
        jnp.transpose(logp_all[:, Vp:Vp + V].reshape(T, B, V), (1, 0, 2)), sentlens)

    loss = loss_sum[0, 0] / (2.0 * n_words)
    return loss, [logp_f, logp_b]


# ------------------------- pure-JAX reference --------------------------------

def reference_forward(raw, word, upos, xpos, ufeats, lemma,
                      next_word, prev_word, sentlens, n_words):
    """Pure-JAX mirror of the PyTorch forward (eval mode), for correctness check."""
    inputs = [raw['word_emb'][word], raw['lemma_emb'][lemma]]
    pos_emb = raw['upos_emb'][upos] + raw['xpos_emb'][xpos]
    feats_emb = 0
    for i in range(ufeats.shape[-1]):
        feats_emb = feats_emb + raw['ufeats_emb'][i][ufeats[:, :, i]]
    inputs += [pos_emb, feats_emb]
    x = jnp.concatenate(inputs, axis=-1)
    x_rev = reverse_padded_sequence(x, sentlens)

    def lstm(xs, p):
        w_ih, w_hh, b_ih, b_hh = p
        Bb = xs.shape[0]
        Hh = w_hh.shape[1]

        def step(carry, x_t):
            h, c = carry
            gates = x_t @ w_ih.T + h @ w_hh.T + b_ih + b_hh
            i, f, g, o = jnp.split(gates, 4, axis=-1)
            c = jax.nn.sigmoid(f) * c + jax.nn.sigmoid(i) * jnp.tanh(g)
            h = jax.nn.sigmoid(o) * jnp.tanh(c)
            return (h, c), h

        init = (jnp.zeros((Bb, Hh), jnp.float32), jnp.zeros((Bb, Hh), jnp.float32))
        _, hs = lax.scan(step, init, jnp.transpose(xs, (1, 0, 2)))
        return jnp.transpose(hs, (1, 0, 2))

    hid_f = lstm(x, raw['lstm_forward'])
    hid_b = reverse_padded_sequence(lstm(x_rev, raw['lstm_backward']), sentlens)
    scores_f = hid_f @ raw['dec_forward_w'].T + raw['dec_forward_b']
    scores_b = hid_b @ raw['dec_backward_w'].T + raw['dec_backward_b']
    logp_f = jax.nn.log_softmax(scores_f, axis=-1)
    logp_b = jax.nn.log_softmax(scores_b, axis=-1)
    next_t = jnp.where(next_word == PAD_ID, -1, next_word)
    prev_t = jnp.where(prev_word == PAD_ID, -1, prev_word)

    def ce_sum(logp, tgt):
        picked = jnp.take_along_axis(logp, jnp.maximum(tgt, 0)[..., None], axis=-1)[..., 0]
        return -jnp.sum(jnp.where(tgt >= 0, picked, 0.0))

    loss = (ce_sum(logp_f, next_t) + ce_sum(logp_b, prev_t)) / (2.0 * n_words)
    return loss, [logp_f, logp_b]


# --------------------------------- main ---------------------------------------

if __name__ == "__main__":
    B, T = 2, 8
    Vw, Vl, Vu, Vx = 64, 32, 16, 16
    feats_lens = [8, 8]
    word_dim, lemma_dim, tag_dim = 16, 16, 8
    H = 32
    input_size = word_dim + lemma_dim + 2 * tag_dim           # 48
    init_range = 0.1

    key = jax.random.PRNGKey(0)
    ks = iter(jax.random.split(key, 40))

    def emb(k, n, d):
        w = jax.random.uniform(k, (n, d), jnp.float32, -init_range, init_range)
        return w.at[0].set(0.0)                               # padding_idx=0

    raw_params = {
        'word_emb': emb(next(ks), Vw, word_dim),
        'lemma_emb': emb(next(ks), Vl, lemma_dim),
        'upos_emb': emb(next(ks), Vu, tag_dim),
        'xpos_emb': emb(next(ks), Vx, tag_dim),
        'ufeats_emb': [emb(next(ks), l, tag_dim) for l in feats_lens],
    }

    def lstm_params(k):
        k1, k2, k3, k4 = jax.random.split(k, 4)
        s = 1.0 / np.sqrt(H)
        return (jax.random.uniform(k1, (4 * H, input_size), jnp.float32, -s, s),
                jax.random.uniform(k2, (4 * H, H), jnp.float32, -s, s),
                jax.random.uniform(k3, (4 * H,), jnp.float32, -s, s),
                jax.random.uniform(k4, (4 * H,), jnp.float32, -s, s))

    raw_params['lstm_forward'] = lstm_params(next(ks))
    raw_params['lstm_backward'] = lstm_params(next(ks))

    sd = 1.0 / np.sqrt(H)
    raw_params['dec_forward_w'] = jax.random.uniform(next(ks), (Vw, H), jnp.float32, -sd, sd)
    raw_params['dec_forward_b'] = jax.random.uniform(next(ks), (Vw,), jnp.float32, -sd, sd)
    raw_params['dec_backward_w'] = jax.random.uniform(next(ks), (Vw, H), jnp.float32, -sd, sd)
    raw_params['dec_backward_b'] = jax.random.uniform(next(ks), (Vw,), jnp.float32, -sd, sd)

    sentlens = jnp.array([8, 6], dtype=jnp.int32)
    valid = jnp.arange(T)[None, :] < sentlens[:, None]

    def rand_ids(k, hi):
        v = jax.random.randint(k, (B, T), 1, hi)
        return jnp.where(valid, v, 0).astype(jnp.int32)

    word = rand_ids(next(ks), Vw)
    lemma = rand_ids(next(ks), Vl)
    upos = rand_ids(next(ks), Vu)
    xpos = rand_ids(next(ks), Vx)
    ufeats = jnp.stack([rand_ids(next(ks), l) for l in feats_lens], axis=-1)
    next_word = rand_ids(next(ks), Vw)
    prev_word = rand_ids(next(ks), Vw)

    # Stand-in for wordchars.size(0) == total number of words in the batch.
    n_words = float(np.sum(np.asarray(sentlens)))

    # One-time weight repacking, then the jitted forward (vocab size baked static).
    params = prepare_params(raw_params)
    forward = jax.jit(functools.partial(lstm_bilm_forward, vocab_size=Vw))

    loss, preds = forward(params, word, upos, xpos, ufeats, lemma,
                          next_word, prev_word, sentlens, n_words)
    loss = jax.block_until_ready(loss)
    preds = [np.asarray(jax.block_until_ready(p)) for p in preds]

    # Correctness check against a pure-JAX reference (tolerance covers differing
    # MXU f32 pass configurations between the Pallas matmuls and XLA).
    with jax.default_matmul_precision("highest"):
        ref_loss, ref_preds = reference_forward(raw_params, word, upos, xpos, ufeats,
                                                lemma, next_word, prev_word,
                                                sentlens, n_words)
    np.testing.assert_allclose(np.asarray(loss), np.asarray(ref_loss),
                               rtol=2e-2, atol=2e-2)
    for p, rp in zip(preds, ref_preds):
        np.testing.assert_allclose(p, np.asarray(rp), rtol=2e-2, atol=2e-2)

    print("KERNEL_OK")
</pallas_src>

<mosaic_0001>
module attributes {stable_mosaic.version = 11 : i64} {
  func.func @_bilm_fused_kernel(%arg0: memref<16x128xf32, #tpu.memory_space<vmem>>, %arg1: memref<128x256xf32, #tpu.memory_space<vmem>>, %arg2: memref<64x256xf32, #tpu.memory_space<vmem>>, %arg3: memref<65x256xf32, #tpu.memory_space<vmem>>, %arg4: memref<16x2xi32, #tpu.memory_space<vmem>>, %arg5: memref<16x256xf32, #tpu.memory_space<vmem>>, %arg6: memref<1x1xf32, #tpu.memory_space<vmem>>, %arg7: memref<16x256xf32, #tpu.memory_space<vmem>>, %arg8: memref<16x65xf32, #tpu.memory_space<vmem>>) attributes {dimension_semantics = [], scalar_prefetch = 0 : i64, scratch_operands = 2 : i64, tpu.core_type = #tpu.core_type<tc>} {
    %c0 = arith.constant 0 : index
    %c0_0 = arith.constant 0 : index
    %0 = vector.load %arg0[%c0, %c0_0] : memref<16x128xf32, #tpu.memory_space<vmem>>, vector<16x128xf32>
    %c0_1 = arith.constant 0 : index
    %c0_2 = arith.constant 0 : index
    %1 = vector.load %arg1[%c0_1, %c0_2] : memref<128x256xf32, #tpu.memory_space<vmem>>, vector<128x256xf32>
    %cst = arith.constant dense<0.000000e+00> : vector<16x256xf32>
    %2 = tpu.matmul %0, %1, %cst {dimension_numbers = #tpu.dot_dimension_numbers<[1], [0], [0], [1], [0, 0, 1, 1], [], []>} : vector<16x128xf32>, vector<128x256xf32>, vector<16x256xf32> -> vector<16x256xf32>
    %c0_3 = arith.constant 0 : index
    %c0_4 = arith.constant 0 : index
    %3 = vector.load %arg7[%c0_3, %c0_4] : memref<16x256xf32, #tpu.memory_space<vmem>>, vector<16x256xf32>
    tpu.vector_store %arg7[%c0_3, %c0_4], %2 {strides = array<i32>} : memref<16x256xf32, #tpu.memory_space<vmem>>, vector<16x256xf32>,
    %c0_5 = arith.constant 0 : index
    %c0_6 = arith.constant 0 : index
    %4 = vector.load %arg2[%c0_5, %c0_6] : memref<64x256xf32, #tpu.memory_space<vmem>>, vector<64x256xf32>
    %cst_7 = arith.constant 1.000000e+00 : f32
    %5 = vector.broadcast %cst_7 : f32 to vector<16x1xf32>
    %c0_8 = arith.constant 0 : index
    %c64 = arith.constant 64 : index
    %6 = vector.load %arg8[%c0_8, %c64] : memref<16x65xf32, #tpu.memory_space<vmem>>, vector<16x1xf32>
    tpu.vector_store %arg8[%c0_8, %c64], %5 {strides = array<i32>} : memref<16x65xf32, #tpu.memory_space<vmem>>, vector<16x1xf32>,
    %cst_9 = arith.constant 0.000000e+00 : f32
    %7 = vector.broadcast %cst_9 : f32 to vector<2x64xf32>
    %cst_10 = arith.constant 0.000000e+00 : f32
    %8 = vector.broadcast %cst_10 : f32 to vector<2x64xf32>
    %c0_11 = arith.constant 0 : index
    %c0_12 = arith.constant 0 : index
    %9 = vector.load %arg7[%c0_11, %c0_12] : memref<16x256xf32, #tpu.memory_space<vmem>>, vector<2x256xf32>
    %cst_13 = arith.constant dense<0.000000e+00> : vector<2x256xf32>
    %10 = tpu.matmul %7, %4, %cst_13 {dimension_numbers = #tpu.dot_dimension_numbers<[1], [0], [0], [1], [0, 0, 1, 1], [], []>} : vector<2x64xf32>, vector<64x256xf32>, vector<2x256xf32> -> vector<2x256xf32>
    %11 = arith.addf %9, %10 : vector<2x256xf32>
    %12 = vector.extract_strided_slice %11 {offsets = [0, 0], sizes = [2, 64], strides = [1, 1]} : vector<2x256xf32> to vector<2x64xf32>
    %13 = arith.negf %12 : vector<2x64xf32>
    %14 = math.exp %13 : vector<2x64xf32>
    %cst_14 = arith.constant 1.000000e+00 : f32
    %15 = vector.broadcast %cst_14 : f32 to vector<2x64xf32>
    %16 = arith.addf %15, %14 : vector<2x64xf32>
    %17 = arith.divf %15, %16 : vector<2x64xf32>
    %18 = vector.extract_strided_slice %11 {offsets = [0, 64], sizes = [2, 64], strides = [1, 1]} : vector<2x256xf32> to vector<2x64xf32>
    %19 = arith.negf %18 : vector<2x64xf32>
    %20 = math.exp %19 : vector<2x64xf32>
    %cst_15 = arith.constant 1.000000e+00 : f32
    %21 = vector.broadcast %cst_15 : f32 to vector<2x64xf32>
    %22 = arith.addf %21, %20 : vector<2x64xf32>
    %23 = arith.divf %21, %22 : vector<2x64xf32>
    %24 = vector.extract_strided_slice %11 {offsets = [0, 128], sizes = [2, 64], strides = [1, 1]} : vector<2x256xf32> to vector<2x64xf32>
    %25 = math.tanh %24 : vector<2x64xf32>
    %26 = vector.extract_strided_slice %11 {offsets = [0, 192], sizes = [2, 64], strides = [1, 1]} : vector<2x256xf32> to vector<2x64xf32>
    %27 = arith.negf %26 : vector<2x64xf32>
    %28 = math.exp %27 : vector<2x64xf32>
    %cst_16 = arith.constant 1.000000e+00 : f32
    %29 = vector.broadcast %cst_16 : f32 to vector<2x64xf32>
    %30 = arith.addf %29, %28 : vector<2x64xf32>
    %31 = arith.divf %29, %30 : vector<2x64xf32>
    %32 = arith.mulf %23, %8 : vector<2x64xf32>
    %33 = arith.mulf %17, %25 : vector<2x64xf32>
    %34 = arith.addf %32, %33 : vector<2x64xf32>
    %35 = math.tanh %34 : vector<2x64xf32>
    %36 = arith.mulf %31, %35 : vector<2x64xf32>
    %c0_17 = arith.constant 0 : index
    %c0_18 = arith.constant 0 : index
    %37 = vector.load %arg8[%c0_17, %c0_18] : memref<16x65xf32, #tpu.memory_space<vmem>>, vector<2x64xf32>
    tpu.vector_store %arg8[%c0_17, %c0_18], %36 {strides = array<i32>} : memref<16x65xf32, #tpu.memory_space<vmem>>, vector<2x64xf32>,
    %c2 = arith.constant 2 : index
    %c0_19 = arith.constant 0 : index
    %38 = vector.load %arg7[%c2, %c0_19] : memref<16x256xf32, #tpu.memory_space<vmem>>, vector<2x256xf32>
    %cst_20 = arith.constant dense<0.000000e+00> : vector<2x256xf32>
    %39 = tpu.matmul %36, %4, %cst_20 {dimension_numbers = #tpu.dot_dimension_numbers<[1], [0], [0], [1], [0, 0, 1, 1], [], []>} : vector<2x64xf32>, vector<64x256xf32>, vector<2x256xf32> -> vector<2x256xf32>
    %40 = arith.addf %38, %39 : vector<2x256xf32>
    %41 = vector.extract_strided_slice %40 {offsets = [0, 0], sizes = [2, 64], strides = [1, 1]} : vector<2x256xf32> to vector<2x64xf32>
    %42 = arith.negf %41 : vector<2x64xf32>
    %43 = math.exp %42 : vector<2x64xf32>
    %cst_21 = arith.constant 1.000000e+00 : f32
    %44 = vector.broadcast %cst_21 : f32 to vector<2x64xf32>
    %45 = arith.addf %44, %43 : vector<2x64xf32>
    %46 = arith.divf %44, %45 : vector<2x64xf32>
    %47 = vector.extract_strided_slice %40 {offsets = [0, 64], sizes = [2, 64], strides = [1, 1]} : vector<2x256xf32> to vector<2x64xf32>
    %48 = arith.negf %47 : vector<2x64xf32>
    %49 = math.exp %48 : vector<2x64xf32>
    %cst_22 = arith.constant 1.000000e+00 : f32
    %50 = vector.broadcast %cst_22 : f32 to vector<2x64xf32>
    %51 = arith.addf %50, %49 : vector<2x64xf32>
    %52 = arith.divf %50, %51 : vector<2x64xf32>
    %53 = vector.extract_strided_slice %40 {offsets = [0, 128], sizes = [2, 64], strides = [1, 1]} : vector<2x256xf32> to vector<2x64xf32>
    %54 = math.tanh %53 : vector<2x64xf32>
    %55 = vector.extract_strided_slice %40 {offsets = [0, 192], sizes = [2, 64], strides = [1, 1]} : vector<2x256xf32> to vector<2x64xf32>
    %56 = arith.negf %55 : vector<2x64xf32>
    %57 = math.exp %56 : vector<2x64xf32>
    %cst_23 = arith.constant 1.000000e+00 : f32
    %58 = vector.broadcast %cst_23 : f32 to vector<2x64xf32>
    %59 = arith.addf %58, %57 : vector<2x64xf32>
    %60 = arith.divf %58, %59 : vector<2x64xf32>
    %61 = arith.mulf %52, %34 : vector<2x64xf32>
    %62 = arith.mulf %46, %54 : vector<2x64xf32>
    %63 = arith.addf %61, %62 : vector<2x64xf32>
    %64 = math.tanh %63 : vector<2x64xf32>
    %65 = arith.mulf %60, %64 : vector<2x64xf32>
    %c2_24 = arith.constant 2 : index
    %c0_25 = arith.constant 0 : index
    %66 = vector.load %arg8[%c2_24, %c0_25] : memref<16x65xf32, #tpu.memory_space<vmem>>, vector<2x64xf32>
    tpu.vector_store %arg8[%c2_24, %c0_25], %65 {strides = array<i32>} : memref<16x65xf32, #tpu.memory_space<vmem>>, vector<2x64xf32>,
    %c4 = arith.constant 4 : index
    %c0_26 = arith.constant 0 : index
    %67 = vector.load %arg7[%c4, %c0_26] : memref<16x256xf32, #tpu.memory_space<vmem>>, vector<2x256xf32>
    %cst_27 = arith.constant dense<0.000000e+00> : vector<2x256xf32>
    %68 = tpu.matmul %65, %4, %cst_27 {dimension_numbers = #tpu.dot_dimension_numbers<[1], [0], [0], [1], [0, 0, 1, 1], [], []>} : vector<2x64xf32>, vector<64x256xf32>, vector<2x256xf32> -> vector<2x256xf32>
    %69 = arith.addf %67, %68 : vector<2x256xf32>
    %70 = vector.extract_strided_slice %69 {offsets = [0, 0], sizes = [2, 64], strides = [1, 1]} : vector<2x256xf32> to vector<2x64xf32>
    %71 = arith.negf %70 : vector<2x64xf32>
    %72 = math.exp %71 : vector<2x64xf32>
    %cst_28 = arith.constant 1.000000e+00 : f32
    %73 = vector.broadcast %cst_28 : f32 to vector<2x64xf32>
    %74 = arith.addf %73, %72 : vector<2x64xf32>
    %75 = arith.divf %73, %74 : vector<2x64xf32>
    %76 = vector.extract_strided_slice %69 {offsets = [0, 64], sizes = [2, 64], strides = [1, 1]} : vector<2x256xf32> to vector<2x64xf32>
    %77 = arith.negf %76 : vector<2x64xf32>
    %78 = math.exp %77 : vector<2x64xf32>
    %cst_29 = arith.constant 1.000000e+00 : f32
    %79 = vector.broadcast %cst_29 : f32 to vector<2x64xf32>
    %80 = arith.addf %79, %78 : vector<2x64xf32>
    %81 = arith.divf %79, %80 : vector<2x64xf32>
    %82 = vector.extract_strided_slice %69 {offsets = [0, 128], sizes = [2, 64], strides = [1, 1]} : vector<2x256xf32> to vector<2x64xf32>
    %83 = math.tanh %82 : vector<2x64xf32>
    %84 = vector.extract_strided_slice %69 {offsets = [0, 192], sizes = [2, 64], strides = [1, 1]} : vector<2x256xf32> to vector<2x64xf32>
    %85 = arith.negf %84 : vector<2x64xf32>
    %86 = math.exp %85 : vector<2x64xf32>
    %cst_30 = arith.constant 1.000000e+00 : f32
    %87 = vector.broadcast %cst_30 : f32 to vector<2x64xf32>
    %88 = arith.addf %87, %86 : vector<2x64xf32>
    %89 = arith.divf %87, %88 : vector<2x64xf32>
    %90 = arith.mulf %81, %63 : vector<2x64xf32>
    %91 = arith.mulf %75, %83 : vector<2x64xf32>
    %92 = arith.addf %90, %91 : vector<2x64xf32>
    %93 = math.tanh %92 : vector<2x64xf32>
    %94 = arith.mulf %89, %93 : vector<2x64xf32>
    %c4_31 = arith.constant 4 : index
    %c0_32 = arith.constant 0 : index
    %95 = vector.load %arg8[%c4_31, %c0_32] : memref<16x65xf32, #tpu.memory_space<vmem>>, vector<2x64xf32>
    tpu.vector_store %arg8[%c4_31, %c0_32], %94 {strides = array<i32>} : memref<16x65xf32, #tpu.memory_space<vmem>>, vector<2x64xf32>,
    %c6 = arith.constant 6 : index
    %c0_33 = arith.constant 0 : index
    %96 = vector.load %arg7[%c6, %c0_33] : memref<16x256xf32, #tpu.memory_space<vmem>>, vector<2x256xf32>
    %cst_34 = arith.constant dense<0.000000e+00> : vector<2x256xf32>
    %97 = tpu.matmul %94, %4, %cst_34 {dimension_numbers = #tpu.dot_dimension_numbers<[1], [0], [0], [1], [0, 0, 1, 1], [], []>} : vector<2x64xf32>, vector<64x256xf32>, vector<2x256xf32> -> vector<2x256xf32>
    %98 = arith.addf %96, %97 : vector<2x256xf32>
    %99 = vector.extract_strided_slice %98 {offsets = [0, 0], sizes = [2, 64], strides = [1, 1]} : vector<2x256xf32> to vector<2x64xf32>
    %100 = arith.negf %99 : vector<2x64xf32>
    %101 = math.exp %100 : vector<2x64xf32>
    %cst_35 = arith.constant 1.000000e+00 : f32
    %102 = vector.broadcast %cst_35 : f32 to vector<2x64xf32>
    %103 = arith.addf %102, %101 : vector<2x64xf32>
    %104 = arith.divf %102, %103 : vector<2x64xf32>
    %105 = vector.extract_strided_slice %98 {offsets = [0, 64], sizes = [2, 64], strides = [1, 1]} : vector<2x256xf32> to vector<2x64xf32>
    %106 = arith.negf %105 : vector<2x64xf32>
    %107 = math.exp %106 : vector<2x64xf32>
    %cst_36 = arith.constant 1.000000e+00 : f32
    %108 = vector.broadcast %cst_36 : f32 to vector<2x64xf32>
    %109 = arith.addf %108, %107 : vector<2x64xf32>
    %110 = arith.divf %108, %109 : vector<2x64xf32>
    %111 = vector.extract_strided_slice %98 {offsets = [0, 128], sizes = [2, 64], strides = [1, 1]} : vector<2x256xf32> to vector<2x64xf32>
    %112 = math.tanh %111 : vector<2x64xf32>
    %113 = vector.extract_strided_slice %98 {offsets = [0, 192], sizes = [2, 64], strides = [1, 1]} : vector<2x256xf32> to vector<2x64xf32>
    %114 = arith.negf %113 : vector<2x64xf32>
    %115 = math.exp %114 : vector<2x64xf32>
    %cst_37 = arith.constant 1.000000e+00 : f32
    %116 = vector.broadcast %cst_37 : f32 to vector<2x64xf32>
    %117 = arith.addf %116, %115 : vector<2x64xf32>
    %118 = arith.divf %116, %117 : vector<2x64xf32>
    %119 = arith.mulf %110, %92 : vector<2x64xf32>
    %120 = arith.mulf %104, %112 : vector<2x64xf32>
    %121 = arith.addf %119, %120 : vector<2x64xf32>
    %122 = math.tanh %121 : vector<2x64xf32>
    %123 = arith.mulf %118, %122 : vector<2x64xf32>
    %c6_38 = arith.constant 6 : index
    %c0_39 = arith.constant 0 : index
    %124 = vector.load %arg8[%c6_38, %c0_39] : memref<16x65xf32, #tpu.memory_space<vmem>>, vector<2x64xf32>
    tpu.vector_store %arg8[%c6_38, %c0_39], %123 {strides = array<i32>} : memref<16x65xf32, #tpu.memory_space<vmem>>, vector<2x64xf32>,
    %c8 = arith.constant 8 : index
    %c0_40 = arith.constant 0 : index
    %125 = vector.load %arg7[%c8, %c0_40] : memref<16x256xf32, #tpu.memory_space<vmem>>, vector<2x256xf32>
    %cst_41 = arith.constant dense<0.000000e+00> : vector<2x256xf32>
    %126 = tpu.matmul %123, %4, %cst_41 {dimension_numbers = #tpu.dot_dimension_numbers<[1], [0], [0], [1], [0, 0, 1, 1], [], []>} : vector<2x64xf32>, vector<64x256xf32>, vector<2x256xf32> -> vector<2x256xf32>
    %127 = arith.addf %125, %126 : vector<2x256xf32>
    %128 = vector.extract_strided_slice %127 {offsets = [0, 0], sizes = [2, 64], strides = [1, 1]} : vector<2x256xf32> to vector<2x64xf32>
    %129 = arith.negf %128 : vector<2x64xf32>
    %130 = math.exp %129 : vector<2x64xf32>
    %cst_42 = arith.constant 1.000000e+00 : f32
    %131 = vector.broadcast %cst_42 : f32 to vector<2x64xf32>
    %132 = arith.addf %131, %130 : vector<2x64xf32>
    %133 = arith.divf %131, %132 : vector<2x64xf32>
    %134 = vector.extract_strided_slice %127 {offsets = [0, 64], sizes = [2, 64], strides = [1, 1]} : vector<2x256xf32> to vector<2x64xf32>
    %135 = arith.negf %134 : vector<2x64xf32>
    %136 = math.exp %135 : vector<2x64xf32>
    %cst_43 = arith.constant 1.000000e+00 : f32
    %137 = vector.broadcast %cst_43 : f32 to vector<2x64xf32>
    %138 = arith.addf %137, %136 : vector<2x64xf32>
    %139 = arith.divf %137, %138 : vector<2x64xf32>
    %140 = vector.extract_strided_slice %127 {offsets = [0, 128], sizes = [2, 64], strides = [1, 1]} : vector<2x256xf32> to vector<2x64xf32>
    %141 = math.tanh %140 : vector<2x64xf32>
    %142 = vector.extract_strided_slice %127 {offsets = [0, 192], sizes = [2, 64], strides = [1, 1]} : vector<2x256xf32> to vector<2x64xf32>
    %143 = arith.negf %142 : vector<2x64xf32>
    %144 = math.exp %143 : vector<2x64xf32>
    %cst_44 = arith.constant 1.000000e+00 : f32
    %145 = vector.broadcast %cst_44 : f32 to vector<2x64xf32>
    %146 = arith.addf %145, %144 : vector<2x64xf32>
    %147 = arith.divf %145, %146 : vector<2x64xf32>
    %148 = arith.mulf %139, %121 : vector<2x64xf32>
    %149 = arith.mulf %133, %141 : vector<2x64xf32>
    %150 = arith.addf %148, %149 : vector<2x64xf32>
    %151 = math.tanh %150 : vector<2x64xf32>
    %152 = arith.mulf %147, %151 : vector<2x64xf32>
    %c8_45 = arith.constant 8 : index
    %c0_46 = arith.constant 0 : index
    %153 = vector.load %arg8[%c8_45, %c0_46] : memref<16x65xf32, #tpu.memory_space<vmem>>, vector<2x64xf32>
    tpu.vector_store %arg8[%c8_45, %c0_46], %152 {strides = array<i32>} : memref<16x65xf32, #tpu.memory_space<vmem>>, vector<2x64xf32>,
    %c10 = arith.constant 10 : index
    %c0_47 = arith.constant 0 : index
    %154 = vector.load %arg7[%c10, %c0_47] : memref<16x256xf32, #tpu.memory_space<vmem>>, vector<2x256xf32>
    %cst_48 = arith.constant dense<0.000000e+00> : vector<2x256xf32>
    %155 = tpu.matmul %152, %4, %cst_48 {dimension_numbers = #tpu.dot_dimension_numbers<[1], [0], [0], [1], [0, 0, 1, 1], [], []>} : vector<2x64xf32>, vector<64x256xf32>, vector<2x256xf32> -> vector<2x256xf32>
    %156 = arith.addf %154, %155 : vector<2x256xf32>
    %157 = vector.extract_strided_slice %156 {offsets = [0, 0], sizes = [2, 64], strides = [1, 1]} : vector<2x256xf32> to vector<2x64xf32>
    %158 = arith.negf %157 : vector<2x64xf32>
    %159 = math.exp %158 : vector<2x64xf32>
    %cst_49 = arith.constant 1.000000e+00 : f32
    %160 = vector.broadcast %cst_49 : f32 to vector<2x64xf32>
    %161 = arith.addf %160, %159 : vector<2x64xf32>
    %162 = arith.divf %160, %161 : vector<2x64xf32>
    %163 = vector.extract_strided_slice %156 {offsets = [0, 64], sizes = [2, 64], strides = [1, 1]} : vector<2x256xf32> to vector<2x64xf32>
    %164 = arith.negf %163 : vector<2x64xf32>
    %165 = math.exp %164 : vector<2x64xf32>
    %cst_50 = arith.constant 1.000000e+00 : f32
    %166 = vector.broadcast %cst_50 : f32 to vector<2x64xf32>
    %167 = arith.addf %166, %165 : vector<2x64xf32>
    %168 = arith.divf %166, %167 : vector<2x64xf32>
    %169 = vector.extract_strided_slice %156 {offsets = [0, 128], sizes = [2, 64], strides = [1, 1]} : vector<2x256xf32> to vector<2x64xf32>
    %170 = math.tanh %169 : vector<2x64xf32>
    %171 = vector.extract_strided_slice %156 {offsets = [0, 192], sizes = [2, 64], strides = [1, 1]} : vector<2x256xf32> to vector<2x64xf32>
    %172 = arith.negf %171 : vector<2x64xf32>
    %173 = math.exp %172 : vector<2x64xf32>
    %cst_51 = arith.constant 1.000000e+00 : f32
    %174 = vector.broadcast %cst_51 : f32 to vector<2x64xf32>
    %175 = arith.addf %174, %173 : vector<2x64xf32>
    %176 = arith.divf %174, %175 : vector<2x64xf32>
    %177 = arith.mulf %168, %150 : vector<2x64xf32>
    %178 = arith.mulf %162, %170 : vector<2x64xf32>
    %179 = arith.addf %177, %178 : vector<2x64xf32>
    %180 = math.tanh %179 : vector<2x64xf32>
    %181 = arith.mulf %176, %180 : vector<2x64xf32>
    %c10_52 = arith.constant 10 : index
    %c0_53 = arith.constant 0 : index
    %182 = vector.load %arg8[%c10_52, %c0_53] : memref<16x65xf32, #tpu.memory_space<vmem>>, vector<2x64xf32>
    tpu.vector_store %arg8[%c10_52, %c0_53], %181 {strides = array<i32>} : memref<16x65xf32, #tpu.memory_space<vmem>>, vector<2x64xf32>,
    %c12 = arith.constant 12 : index
    %c0_54 = arith.constant 0 : index
    %183 = vector.load %arg7[%c12, %c0_54] : memref<16x256xf32, #tpu.memory_space<vmem>>, vector<2x256xf32>
    %cst_55 = arith.constant dense<0.000000e+00> : vector<2x256xf32>
    %184 = tpu.matmul %181, %4, %cst_55 {dimension_numbers = #tpu.dot_dimension_numbers<[1], [0], [0], [1], [0, 0, 1, 1], [], []>} : vector<2x64xf32>, vector<64x256xf32>, vector<2x256xf32> -> vector<2x256xf32>
    %185 = arith.addf %183, %184 : vector<2x256xf32>
    %186 = vector.extract_strided_slice %185 {offsets = [0, 0], sizes = [2, 64], strides = [1, 1]} : vector<2x256xf32> to vector<2x64xf32>
    %187 = arith.negf %186 : vector<2x64xf32>
    %188 = math.exp %187 : vector<2x64xf32>
    %cst_56 = arith.constant 1.000000e+00 : f32
    %189 = vector.broadcast %cst_56 : f32 to vector<2x64xf32>
    %190 = arith.addf %189, %188 : vector<2x64xf32>
    %191 = arith.divf %189, %190 : vector<2x64xf32>
    %192 = vector.extract_strided_slice %185 {offsets = [0, 64], sizes = [2, 64], strides = [1, 1]} : vector<2x256xf32> to vector<2x64xf32>
    %193 = arith.negf %192 : vector<2x64xf32>
    %194 = math.exp %193 : vector<2x64xf32>
    %cst_57 = arith.constant 1.000000e+00 : f32
    %195 = vector.broadcast %cst_57 : f32 to vector<2x64xf32>
    %196 = arith.addf %195, %194 : vector<2x64xf32>
    %197 = arith.divf %195, %196 : vector<2x64xf32>
    %198 = vector.extract_strided_slice %185 {offsets = [0, 128], sizes = [2, 64], strides = [1, 1]} : vector<2x256xf32> to vector<2x64xf32>
    %199 = math.tanh %198 : vector<2x64xf32>
    %200 = vector.extract_strided_slice %185 {offsets = [0, 192], sizes = [2, 64], strides = [1, 1]} : vector<2x256xf32> to vector<2x64xf32>
    %201 = arith.negf %200 : vector<2x64xf32>
    %202 = math.exp %201 : vector<2x64xf32>
    %cst_58 = arith.constant 1.000000e+00 : f32
    %203 = vector.broadcast %cst_58 : f32 to vector<2x64xf32>
    %204 = arith.addf %203, %202 : vector<2x64xf32>
    %205 = arith.divf %203, %204 : vector<2x64xf32>
    %206 = arith.mulf %197, %179 : vector<2x64xf32>
    %207 = arith.mulf %191, %199 : vector<2x64xf32>
    %208 = arith.addf %206, %207 : vector<2x64xf32>
    %209 = math.tanh %208 : vector<2x64xf32>
    %210 = arith.mulf %205, %209 : vector<2x64xf32>
    %c12_59 = arith.constant 12 : index
    %c0_60 = arith.constant 0 : index
    %211 = vector.load %arg8[%c12_59, %c0_60] : memref<16x65xf32, #tpu.memory_space<vmem>>, vector<2x64xf32>
    tpu.vector_store %arg8[%c12_59, %c0_60], %210 {strides = array<i32>} : memref<16x65xf32, #tpu.memory_space<vmem>>, vector<2x64xf32>,
    %c14 = arith.constant 14 : index
    %c0_61 = arith.constant 0 : index
    %212 = vector.load %arg7[%c14, %c0_61] : memref<16x256xf32, #tpu.memory_space<vmem>>, vector<2x256xf32>
    %cst_62 = arith.constant dense<0.000000e+00> : vector<2x256xf32>
    %213 = tpu.matmul %210, %4, %cst_62 {dimension_numbers = #tpu.dot_dimension_numbers<[1], [0], [0], [1], [0, 0, 1, 1], [], []>} : vector<2x64xf32>, vector<64x256xf32>, vector<2x256xf32> -> vector<2x256xf32>
    %214 = arith.addf %212, %213 : vector<2x256xf32>
    %215 = vector.extract_strided_slice %214 {offsets = [0, 0], sizes = [2, 64], strides = [1, 1]} : vector<2x256xf32> to vector<2x64xf32>
    %216 = arith.negf %215 : vector<2x64xf32>
    %217 = math.exp %216 : vector<2x64xf32>
    %cst_63 = arith.constant 1.000000e+00 : f32
    %218 = vector.broadcast %cst_63 : f32 to vector<2x64xf32>
    %219 = arith.addf %218, %217 : vector<2x64xf32>
    %220 = arith.divf %218, %219 : vector<2x64xf32>
    %221 = vector.extract_strided_slice %214 {offsets = [0, 64], sizes = [2, 64], strides = [1, 1]} : vector<2x256xf32> to vector<2x64xf32>
    %222 = arith.negf %221 : vector<2x64xf32>
    %223 = math.exp %222 : vector<2x64xf32>
    %cst_64 = arith.constant 1.000000e+00 : f32
    %224 = vector.broadcast %cst_64 : f32 to vector<2x64xf32>
    %225 = arith.addf %224, %223 : vector<2x64xf32>
    %226 = arith.divf %224, %225 : vector<2x64xf32>
    %227 = vector.extract_strided_slice %214 {offsets = [0, 128], sizes = [2, 64], strides = [1, 1]} : vector<2x256xf32> to vector<2x64xf32>
    %228 = math.tanh %227 : vector<2x64xf32>
    %229 = vector.extract_strided_slice %214 {offsets = [0, 192], sizes = [2, 64], strides = [1, 1]} : vector<2x256xf32> to vector<2x64xf32>
    %230 = arith.negf %229 : vector<2x64xf32>
    %231 = math.exp %230 : vector<2x64xf32>
    %cst_65 = arith.constant 1.000000e+00 : f32
    %232 = vector.broadcast %cst_65 : f32 to vector<2x64xf32>
    %233 = arith.addf %232, %231 : vector<2x64xf32>
    %234 = arith.divf %232, %233 : vector<2x64xf32>
    %235 = arith.mulf %226, %208 : vector<2x64xf32>
    %236 = arith.mulf %220, %228 : vector<2x64xf32>
    %237 = arith.addf %235, %236 : vector<2x64xf32>
    %238 = math.tanh %237 : vector<2x64xf32>
    %239 = arith.mulf %234, %238 : vector<2x64xf32>
    %c14_66 = arith.constant 14 : index
    %c0_67 = arith.constant 0 : index
    %240 = vector.load %arg8[%c14_66, %c0_67] : memref<16x65xf32, #tpu.memory_space<vmem>>, vector<2x64xf32>
    tpu.vector_store %arg8[%c14_66, %c0_67], %239 {strides = array<i32>} : memref<16x65xf32, #tpu.memory_space<vmem>>, vector<2x64xf32>,
    %c0_68 = arith.constant 0 : index
    %c0_69 = arith.constant 0 : index
    %241 = vector.load %arg8[%c0_68, %c0_69] : memref<16x65xf32, #tpu.memory_space<vmem>>, vector<16x65xf32>
    %c0_70 = arith.constant 0 : index
    %c0_71 = arith.constant 0 : index
    %242 = vector.load %arg3[%c0_70, %c0_71] : memref<65x256xf32, #tpu.memory_space<vmem>>, vector<65x256xf32>
    %cst_72 = arith.constant dense<0.000000e+00> : vector<16x256xf32>
    %243 = tpu.matmul %241, %242, %cst_72 {dimension_numbers = #tpu.dot_dimension_numbers<[1], [0], [0], [1], [0, 0, 1, 1], [], []>} : vector<16x65xf32>, vector<65x256xf32>, vector<16x256xf32> -> vector<16x256xf32>
    %244 = tpu.iota {dimensions = array<i32: 1>} : vector<16x128xi32>
    %245 = vector.extract_strided_slice %243 {offsets = [0, 0], sizes = [16, 128], strides = [1, 1]} : vector<16x256xf32> to vector<16x128xf32>
    %c64_i32 = arith.constant 64 : i32
    %246 = vector.broadcast %c64_i32 : i32 to vector<16x128xi32>
    %247 = arith.cmpi slt, %244, %246 : vector<16x128xi32>
    %cst_73 = arith.constant -1.000000e+30 : f32
    %248 = vector.broadcast %cst_73 : f32 to vector<16x128xf32>
    %249 = arith.select %247, %245, %248 : vector<16x128xi1>, vector<16x128xf32>
    %cst_74 = arith.constant dense<0xFF800000> : vector<16xf32>
    %250 = vector.multi_reduction <maximumf>, %249, %cst_74 [1] : vector<16x128xf32> to vector<16xf32>
    %251 = vector.shape_cast %250 : vector<16xf32> to vector<16x1xf32>
    %252 = vector.broadcast %251 : vector<16x1xf32> to vector<16x128xf32>
    %253 = arith.subf %249, %252 : vector<16x128xf32>
    %254 = math.exp %253 : vector<16x128xf32>
    %cst_75 = arith.constant dense<0.000000e+00> : vector<16xf32>
    %255 = vector.multi_reduction <add>, %254, %cst_75 [1] : vector<16x128xf32> to vector<16xf32>
    %256 = vector.shape_cast %255 : vector<16xf32> to vector<16x1xf32>
    %257 = math.log %256 : vector<16x1xf32>
    %258 = arith.addf %257, %251 : vector<16x1xf32>
    %259 = vector.broadcast %258 : vector<16x1xf32> to vector<16x128xf32>
    %260 = arith.subf %249, %259 : vector<16x128xf32>
    %261 = vector.extract_strided_slice %243 {offsets = [0, 128], sizes = [16, 128], strides = [1, 1]} : vector<16x256xf32> to vector<16x128xf32>
    %c64_i32_76 = arith.constant 64 : i32
    %262 = vector.broadcast %c64_i32_76 : i32 to vector<16x128xi32>
    %263 = arith.cmpi slt, %244, %262 : vector<16x128xi32>
    %cst_77 = arith.constant -1.000000e+30 : f32
    %264 = vector.broadcast %cst_77 : f32 to vector<16x128xf32>
    %265 = arith.select %263, %261, %264 : vector<16x128xi1>, vector<16x128xf32>
    %cst_78 = arith.constant dense<0xFF800000> : vector<16xf32>
    %266 = vector.multi_reduction <maximumf>, %265, %cst_78 [1] : vector<16x128xf32> to vector<16xf32>
    %267 = vector.shape_cast %266 : vector<16xf32> to vector<16x1xf32>
    %268 = vector.broadcast %267 : vector<16x1xf32> to vector<16x128xf32>
    %269 = arith.subf %265, %268 : vector<16x128xf32>
    %270 = math.exp %269 : vector<16x128xf32>
    %cst_79 = arith.constant dense<0.000000e+00> : vector<16xf32>
    %271 = vector.multi_reduction <add>, %270, %cst_79 [1] : vector<16x128xf32> to vector<16xf32>
    %272 = vector.shape_cast %271 : vector<16xf32> to vector<16x1xf32>
    %273 = math.log %272 : vector<16x1xf32>
    %274 = arith.addf %273, %267 : vector<16x1xf32>
    %275 = vector.broadcast %274 : vector<16x1xf32> to vector<16x128xf32>
    %276 = arith.subf %265, %275 : vector<16x128xf32>
    %277 = tpu.concatenate %260, %276 in 1 : vector<16x128xf32>, vector<16x128xf32> -> vector<16x256xf32>
    %c0_80 = arith.constant 0 : index
    %c0_81 = arith.constant 0 : index
    %278 = vector.load %arg5[%c0_80, %c0_81] : memref<16x256xf32, #tpu.memory_space<vmem>>, vector<16x256xf32>
    tpu.vector_store %arg5[%c0_80, %c0_81], %277 {strides = array<i32>} : memref<16x256xf32, #tpu.memory_space<vmem>>, vector<16x256xf32>,
    %c0_82 = arith.constant 0 : index
    %c0_83 = arith.constant 0 : index
    %279 = vector.load %arg4[%c0_82, %c0_83] : memref<16x2xi32, #tpu.memory_space<vmem>>, vector<16x2xi32>
    %280 = vector.extract_strided_slice %279 {offsets = [0, 0], sizes = [16, 1], strides = [1, 1]} : vector<16x2xi32> to vector<16x1xi32>
    %281 = vector.broadcast %280 : vector<16x1xi32> to vector<16x128xi32>
    %282 = arith.cmpi eq, %244, %281 : vector<16x128xi32>
    %cst_84 = arith.constant 0.000000e+00 : f32
    %283 = vector.broadcast %cst_84 : f32 to vector<16x128xf32>
    %284 = arith.select %282, %260, %283 : vector<16x128xi1>, vector<16x128xf32>
    %285 = vector.extract_strided_slice %279 {offsets = [0, 1], sizes = [16, 1], strides = [1, 1]} : vector<16x2xi32> to vector<16x1xi32>
    %286 = vector.broadcast %285 : vector<16x1xi32> to vector<16x128xi32>
    %287 = arith.cmpi eq, %244, %286 : vector<16x128xi32>
    %cst_85 = arith.constant 0.000000e+00 : f32
    %288 = vector.broadcast %cst_85 : f32 to vector<16x128xf32>
    %289 = arith.select %287, %276, %288 : vector<16x128xi1>, vector<16x128xf32>
    %290 = vector.shape_cast %284 : vector<16x128xf32> to vector<1x16x128xf32>
    %cst_86 = arith.constant dense<0.000000e+00> : vector<1xf32>
    %291 = vector.multi_reduction <add>, %290, %cst_86 [1, 2] : vector<1x16x128xf32> to vector<1xf32>
    %292 = vector.shape_cast %291 : vector<1xf32> to vector<1x1x1xf32>
    %293 = vector.extract %292[0, 0, 0] : f32 from vector<1x1x1xf32>
    %294 = vector.shape_cast %289 : vector<16x128xf32> to vector<1x16x128xf32>
    %cst_87 = arith.constant dense<0.000000e+00> : vector<1xf32>
    %295 = vector.multi_reduction <add>, %294, %cst_87 [1, 2] : vector<1x16x128xf32> to vector<1xf32>
    %296 = vector.shape_cast %295 : vector<1xf32> to vector<1x1x1xf32>
    %297 = vector.extract %296[0, 0, 0] : f32 from vector<1x1x1xf32>
    %298 = arith.addf %293, %297 : f32
    %cst_88 = arith.constant 0.000000e+00 : f32
    %299 = arith.subf %cst_88, %298 : f32
    %300 = vector.broadcast %299 : f32 to vector<1x1xf32>
    %c0_89 = arith.constant 0 : index
    %c0_90 = arith.constant 0 : index
    %301 = vector.load %arg6[%c0_89, %c0_90] : memref<1x1xf32, #tpu.memory_space<vmem>>, vector<1x1xf32>
    tpu.vector_store %arg6[%c0_89, %c0_90], %300 {strides = array<i32>} : memref<1x1xf32, #tpu.memory_space<vmem>>, vector<1x1xf32>,
    return
  }
}

</mosaic_0001>

<llo_original>
// kernel: lstm_bilm_forward.1
$region0: #{lstm_bilm_forward.1}
  #allocation0 [shape = 'u32[]', space=smem, size = 0x4, offset = 0x4, fixed_abs, tag = 'smem constant byte address 0x4 - core index']
  #allocation1 [shape = 'u32[144,128]{1,0:T(1,128)}', space=vmem, size = 0x12000, scoped, tag = 'internal scratch']
  #allocation2 [shape = 'f32[16,256]{1,0:T(8,128)}', space=vmem, size = 0x4000, scoped, tag = 'scratch operand']
  #allocation3 [shape = 'f32[16,65]{1,0:T(8,128)}', space=vmem, size = 0x2000, scoped, tag = 'scratch operand']
  %s0 = inlined_call_operand.vmem [shape: f32[16,128], index: 0, kind: input, shape index: {}]
  %s1 = inlined_call_operand.vmem [shape: f32[128,256], index: 1, kind: input, shape index: {}]
  %s2 = inlined_call_operand.vmem [shape: f32[64,256], index: 2, kind: input, shape index: {}]
  %s3 = inlined_call_operand.vmem [shape: f32[65,256], index: 3, kind: input, shape index: {}]
  %s4 = inlined_call_operand.vmem [shape: s32[16,2], index: 4, kind: input, shape index: {}]
  %s5 = inlined_call_operand.vmem [shape: f32[16,256], index: 5, kind: output, shape index: {0}]
  %s6 = inlined_call_operand.hbm [shape: f32[1,1], index: 6, kind: output, shape index: {1}]
  %7 = xla_tuple %s5, %s6
  %s8 = sld [smem:[#allocation0]]
  $region38: #{lstm_bilm_forward.1} parent=0
    _
  %s10 = ssub.s32 1, %s8
  %s11 = scalar_select 0, %s10, %s8
  $region1: #{lstm_bilm_forward.1} parent=0
    #allocation4 [shape = 'u8[512]{0}', space=vmem, size = 0x400, scoped, tag = 'output window, operand 1, single buffered']
    #allocation5 [shape = 's32[1]{0}', space=sflag, size = 0x4, scoped, tag = 'scoped memory for lstm_bilm_forward.1']
    %12 = vsyncpa [#allocation5], 0
    // Predicated region
    $region2: #{lstm_bilm_forward.1} parent=1 // pred_check
      _
    $region3: #{lstm_bilm_forward.1} parent=1 // pred_check_branch
      %14 = sbr.rel (0) target = $region5
    $region4: #{lstm_bilm_forward.1} parent=1 // pred_region
      _
    $region5: #{lstm_bilm_forward.1} parent=1 // pred_fallthru
      _
    // Predicated region
    $region6: #{lstm_bilm_forward.1} parent=1 // pred_check
      _
    $region7: #{lstm_bilm_forward.1} parent=1 // pred_check_branch
      %16 = sbr.rel (0) target = $region9
    $region8: #{lstm_bilm_forward.1} parent=1 // pred_region
      _
    $region9: #{lstm_bilm_forward.1} parent=1 // pred_fallthru
      _
    // Predicated region
    $region10: #{lstm_bilm_forward.1} parent=1 // pred_check
      _
    $region11: #{lstm_bilm_forward.1} parent=1 // pred_check_branch
      %18 = sbr.rel (0) target = $region13
    $region12: #{lstm_bilm_forward.1} parent=1 // pred_region
      _
    $region13: #{lstm_bilm_forward.1} parent=1 // pred_fallthru
      _
    // Predicated region
    $region14: #{lstm_bilm_forward.1} parent=1 // pred_check
      _
    $region15: #{lstm_bilm_forward.1} parent=1 // pred_check_branch
      %20 = sbr.rel (0) target = $region17
    $region16: #{lstm_bilm_forward.1} parent=1 // pred_region
      _
    $region17: #{lstm_bilm_forward.1} parent=1 // pred_fallthru
      _
    // Predicated region
    $region18: #{lstm_bilm_forward.1} parent=1 // pred_check
      _
    $region19: #{lstm_bilm_forward.1} parent=1 // pred_check_branch
      %22 = sbr.rel (0) target = $region21
    $region20: #{lstm_bilm_forward.1} parent=1 // pred_region
      _
    $region21: #{lstm_bilm_forward.1} parent=1 // pred_fallthru
      _
    %v23 = vld [vmem:[%s0] sm:$0xff]
    %v24 = vld [vmem:[%s0 + $0x8] sm:$0xff]
    %v25 = vld [vmem:[%s1] sm:$0xff]
    %v26 = vld [vmem:[%s1 + $0x8] sm:$0xff]
    %v27 = vld [vmem:[%s1 + $0x10] sm:$0xff]
    %v28 = vld [vmem:[%s1 + $0x18] sm:$0xff]
    %v29 = vld [vmem:[%s1 + $0x20] sm:$0xff]
    %v30 = vld [vmem:[%s1 + $0x28] sm:$0xff]
    %v31 = vld [vmem:[%s1 + $0x30] sm:$0xff]
    %v32 = vld [vmem:[%s1 + $0x38] sm:$0xff]
    %v33 = vld [vmem:[%s1 + $0x40] sm:$0xff]
    %v34 = vld [vmem:[%s1 + $0x48] sm:$0xff]
    %v35 = vld [vmem:[%s1 + $0x50] sm:$0xff]
    %v36 = vld [vmem:[%s1 + $0x58] sm:$0xff]
    %v37 = vld [vmem:[%s1 + $0x60] sm:$0xff]
    %v38 = vld [vmem:[%s1 + $0x68] sm:$0xff]
    %v39 = vld [vmem:[%s1 + $0x70] sm:$0xff]
    %v40 = vld [vmem:[%s1 + $0x78] sm:$0xff]
    %v41 = vld [vmem:[%s1 + $0x80] sm:$0xff]
    %v42 = vld [vmem:[%s1 + $0x88] sm:$0xff]
    %v43 = vld [vmem:[%s1 + $0x90] sm:$0xff]
    %v44 = vld [vmem:[%s1 + $0x98] sm:$0xff]
    %v45 = vld [vmem:[%s1 + $0xa0] sm:$0xff]
    %v46 = vld [vmem:[%s1 + $0xa8] sm:$0xff]
    %v47 = vld [vmem:[%s1 + $0xb0] sm:$0xff]
    %v48 = vld [vmem:[%s1 + $0xb8] sm:$0xff]
    %v49 = vld [vmem:[%s1 + $0xc0] sm:$0xff]
    %v50 = vld [vmem:[%s1 + $0xc8] sm:$0xff]
    %v51 = vld [vmem:[%s1 + $0xd0] sm:$0xff]
    %v52 = vld [vmem:[%s1 + $0xd8] sm:$0xff]
    %v53 = vld [vmem:[%s1 + $0xe0] sm:$0xff]
    %v54 = vld [vmem:[%s1 + $0xe8] sm:$0xff]
    %v55 = vld [vmem:[%s1 + $0xf0] sm:$0xff]
    %v56 = vld [vmem:[%s1 + $0xf8] sm:$0xff]
    %57 = vmatprep.subr.mxu0 %v26
    %58 = vmatpush1.msra.mxu0 %v25
    %59 = vmatprep.subr.mxu0 %v28
    %60 = vmatpush1.msra.mxu0 %v27
    %61 = vmatprep.subr.mxu0 %v30
    %62 = vmatpush1.msra.mxu0 %v29
    %63 = vmatprep.subr.mxu0 %v32
    %64 = vmatpush1.msra.mxu0 %v31
    %65 = vmatprep.subr.mxu0 %v34
    %66 = vmatpush1.msra.mxu0 %v33
    %67 = vmatprep.subr.mxu0 %v36
    %68 = vmatpush1.msra.mxu0 %v35
    %69 = vmatprep.subr.mxu0 %v38
    %70 = vmatpush1.msra.mxu0 %v37
    %71 = vmatprep.subr.mxu0 %v40
    %72 = vmatpush1.msra.mxu0 %v39
    %73 = vmatprep.subr.mxu0 %v42
    %74 = vmatpush1.msra.mxu0 %v41
    %75 = vmatprep.subr.mxu0 %v44
    %76 = vmatpush1.msra.mxu0 %v43
    %77 = vmatprep.subr.mxu0 %v46
    %78 = vmatpush1.msra.mxu0 %v45
    %79 = vmatprep.subr.mxu0 %v48
    %80 = vmatpush1.msra.mxu0 %v47
    %81 = vmatprep.subr.mxu0 %v50
    %82 = vmatpush1.msra.mxu0 %v49
    %83 = vmatprep.subr.mxu0 %v52
    %84 = vmatpush1.msra.mxu0 %v51
    %85 = vmatprep.subr.mxu0 %v54
    %86 = vmatpush1.msra.mxu0 %v53
    %87 = vmatprep.subr.mxu0 %v56
    %88 = vmatpush1.msra.mxu0 %v55
    %89 = vmatprep.subr.mxu0 0.0
    %90 = vmatpush1.msra.mxu0 0.0
    %91 = vmatprep.subr.mxu0 0.0
    %92 = vmatpush1.msra.mxu0 0.0
    %93 = vmatprep.subr.mxu0 0.0
    %94 = vmatpush1.msra.mxu0 0.0
    %95 = vmatprep.subr.mxu0 0.0
    %96 = vmatpush1.msra.mxu0 0.0
    %97 = vmatprep.subr.mxu0 0.0
    %98 = vmatpush1.msra.mxu0 0.0
    %99 = vmatprep.subr.mxu0 0.0
    %100 = vmatpush1.msra.mxu0 0.0
    %101 = vmatprep.subr.mxu0 0.0
    %102 = vmatpush1.msra.mxu0 0.0
    %103 = vmatprep.subr.mxu0 0.0
    %104 = vmatpush1.msra.mxu0 0.0
    %105 = vmatprep.subr.mxu0 0.0
    %106 = vmatpush1.msra.mxu0 0.0
    %107 = vmatprep.subr.mxu0 0.0
    %108 = vmatpush1.msra.mxu0 0.0
    %109 = vmatprep.subr.mxu0 0.0
    %110 = vmatpush1.msra.mxu0 0.0
    %111 = vmatprep.subr.mxu0 0.0
    %112 = vmatpush1.msra.mxu0 0.0
    %113 = vmatprep.subr.mxu0 0.0
    %114 = vmatpush1.msra.mxu0 0.0
    %115 = vmatprep.subr.mxu0 0.0
    %116 = vmatpush1.msra.mxu0 0.0
    %117 = vmatprep.subr.mxu0 0.0
    %118 = vmatpush1.msra.mxu0 0.0
    %119 = vmatprep.subr.mxu0 0.0
    %120 = vmatpush1.msra.mxu0 0.0
    %121 = vmatprep.mubr.f32.mxu0 0.0
    %122 = vmatmul.mubr.f32.gmra.mrb[0].mxu0 %v23
    %v123 = vpop.f32.mrb[0].mxu0
    %v124 = vadd.f32 0.0, %v123
    %v125 = vpop.f32.mrb[0].mxu0
    %v126 = vadd.f32 0.0, %v125
    %127 = vmatprep.mubr.f32.mxu0 0.0
    %128 = vmatmul.mubr.f32.gmra.mrb[0].mxu0 %v24
    %v129 = vpop.f32.mrb[0].mxu0
    %v130 = vadd.f32 0.0, %v129
    %v131 = vpop.f32.mrb[0].mxu0
    %v132 = vadd.f32 0.0, %v131
    %133 = vdwg.mxu0
    %134 = vst [vmem:[#allocation2] sm:$0xff] %v124
    %135 = vst [vmem:[#allocation2 + $0x8] sm:$0xff] %v126
    %136 = vst [vmem:[#allocation2 + $0x10] sm:$0xff] %v130
    %137 = vst [vmem:[#allocation2 + $0x18] sm:$0xff] %v132
    %v138 = vld [vmem:[%s2] sm:$0xff]
    %v139 = vld [vmem:[%s2 + $0x8] sm:$0xff]
    %v140 = vld [vmem:[%s2 + $0x10] sm:$0xff]
    %v141 = vld [vmem:[%s2 + $0x18] sm:$0xff]
    %v142 = vld [vmem:[%s2 + $0x20] sm:$0xff]
    %v143 = vld [vmem:[%s2 + $0x28] sm:$0xff]
    %v144 = vld [vmem:[%s2 + $0x30] sm:$0xff]
    %v145 = vld [vmem:[%s2 + $0x38] sm:$0xff]
    %v146 = vld [vmem:[%s2 + $0x40] sm:$0xff]
    %v147 = vld [vmem:[%s2 + $0x48] sm:$0xff]
    %v148 = vld [vmem:[%s2 + $0x50] sm:$0xff]
    %v149 = vld [vmem:[%s2 + $0x58] sm:$0xff]
    %v150 = vld [vmem:[%s2 + $0x60] sm:$0xff]
    %v151 = vld [vmem:[%s2 + $0x68] sm:$0xff]
    %v152 = vld [vmem:[%s2 + $0x70] sm:$0xff]
    %v153 = vld [vmem:[%s2 + $0x78] sm:$0xff]
    %vm154 = vcmask 531968
    %155 = vst.msk [vmem:[#allocation3] sm:$0xff] %vm154, 1.0
    %156 = vst.msk [vmem:[#allocation3 + $0x8] sm:$0xff] %vm154, 1.0
    %v157 = vld [vmem:[#allocation2] sm:$0x3]
    %v158 = vld [vmem:[#allocation2 + $0x8] sm:$0x3]
    %vm159 = vcmask 523264
    %v161 = vsel %vm159, 0.0, 0
    %163 = vmatprep.subr.mxu0 %v139
    %164 = vmatpush1.msra.mxu0 %v138
    %165 = vmatprep.subr.mxu0 %v141
    %166 = vmatpush1.msra.mxu0 %v140
    %167 = vmatprep.subr.mxu0 %v143
    %168 = vmatpush1.msra.mxu0 %v142
    %169 = vmatprep.subr.mxu0 %v145
    %170 = vmatpush1.msra.mxu0 %v144
    %171 = vmatprep.subr.mxu0 %v147
    %172 = vmatpush1.msra.mxu0 %v146
    %173 = vmatprep.subr.mxu0 %v149
    %174 = vmatpush1.msra.mxu0 %v148
    %175 = vmatprep.subr.mxu0 %v151
    %176 = vmatpush1.msra.mxu0 %v150
    %177 = vmatprep.subr.mxu0 %v153
    %178 = vmatpush1.msra.mxu0 %v152
    %179 = vmatprep.subr.mxu0 0.0
    %180 = vmatpush1.msra.mxu0 0.0
    %181 = vmatprep.subr.mxu0 0.0
    %182 = vmatpush1.msra.mxu0 0.0
    %183 = vmatprep.subr.mxu0 0.0
    %184 = vmatpush1.msra.mxu0 0.0
    %185 = vmatprep.subr.mxu0 0.0
    %186 = vmatpush1.msra.mxu0 0.0
    %187 = vmatprep.subr.mxu0 0.0
    %188 = vmatpush1.msra.mxu0 0.0
    %189 = vmatprep.subr.mxu0 0.0
    %190 = vmatpush1.msra.mxu0 0.0
    %191 = vmatprep.subr.mxu0 0.0
    %192 = vmatpush1.msra.mxu0 0.0
    %193 = vmatprep.subr.mxu0 0.0
    %194 = vmatpush1.msra.mxu0 0.0
    %195 = vmatprep.subr.mxu0 0.0
    %196 = vmatpush1.msra.mxu0 0.0
    %197 = vmatprep.subr.mxu0 0.0
    %198 = vmatpush1.msra.mxu0 0.0
    %199 = vmatprep.subr.mxu0 0.0
    %200 = vmatpush1.msra.mxu0 0.0
    %201 = vmatprep.subr.mxu0 0.0
    %202 = vmatpush1.msra.mxu0 0.0
    %203 = vmatprep.subr.mxu0 0.0
    %204 = vmatpush1.msra.mxu0 0.0
    %205 = vmatprep.subr.mxu0 0.0
    %206 = vmatpush1.msra.mxu0 0.0
    %207 = vmatprep.subr.mxu0 0.0
    %208 = vmatpush1.msra.mxu0 0.0
    %209 = vmatprep.subr.mxu0 0.0
    %210 = vmatpush1.msra.mxu0 0.0
    %211 = vmatprep.subr.mxu0 0.0
    %212 = vmatpush1.msra.mxu0 0.0
    %213 = vmatprep.subr.mxu0 0.0
    %214 = vmatpush1.msra.mxu0 0.0
    %215 = vmatprep.subr.mxu0 0.0
    %216 = vmatpush1.msra.mxu0 0.0
    %217 = vmatprep.subr.mxu0 0.0
    %218 = vmatpush1.msra.mxu0 0.0
    %219 = vmatprep.subr.mxu0 0.0
    %220 = vmatpush1.msra.mxu0 0.0
    %221 = vmatprep.subr.mxu0 0.0
    %222 = vmatpush1.msra.mxu0 0.0
    %223 = vmatprep.subr.mxu0 0.0
    %224 = vmatpush1.msra.mxu0 0.0
    %225 = vmatprep.subr.mxu0 0.0
    %226 = vmatpush1.msra.mxu0 0.0
    %227 = vmatprep.mubr.f32.mxu0 0.0
    %228 = vmatmul.mubr.f32.gmra.mrb[0].mxu0 %v161
    %v229 = vpop.f32.mrb[0].mxu0
    %v230 = vadd.f32 0.0, %v229
    %v231 = vpop.f32.mrb[0].mxu0
    %v232 = vadd.f32 0.0, %v231
    %233 = vdwg.mxu0
    %v234 = vadd.f32 %v157, %v230
    %v235 = vadd.f32 %v158, %v232
    %v236 = vxor.u32 %v234, 2147483648
    %v237 = vmul.f32 %v236, 1.442695
    %v238 = vpow.pop %v237
    %v239 = vadd.f32 %v238, 1.0
    %v240 = vrcp.pop %v239
    %v241 = vmul.f32 1.0, %v240
    %v242 = vtanh.pop %v235
    %v243 = vxor.u32 %v235, 2147483648
    %v244 = vmul.f32 %v243, 1.442695
    %v245 = vpow.pop %v244
    %v246 = vadd.f32 %v245, 1.0
    %v247 = vrcp.pop %v246
    %v248 = vmul.f32 1.0, %v247
    %v249 = vmul.f32 %v241, 0.0
    %v250 = vmul.f32 %v241, %v242
    %252 = vrot.lane.b32.xlu0 %v250, 64
    %v253 = vpop.permute.xlu0 %252
    %v255 = vadd.f32 %v249, %v253
    %v256 = vtanh.pop %v255
    %v257 = vmul.f32 %v248, %v256
    %259 = vrot.lane.b32.xlu0 %v257, 64
    %v260 = vpop.permute.xlu0 %259
    %vm262 = vcmask 517120
    %263 = vst.msk [vmem:[#allocation3] sm:$0x3] %vm262, %v260
    %v264 = vld [vmem:[#allocation2] sm:$0xc]
    %v265 = vld [vmem:[#allocation2 + $0x8] sm:$0xc]
    %v266 = vsel %vm159, %v260, 0
    %268 = vmatprep.subr.mxu0 %v139
    %269 = vmatpush1.msra.mxu0 %v138
    %270 = vmatprep.subr.mxu0 %v141
    %271 = vmatpush1.msra.mxu0 %v140
    %272 = vmatprep.subr.mxu0 %v143
    %273 = vmatpush1.msra.mxu0 %v142
    %274 = vmatprep.subr.mxu0 %v145
    %275 = vmatpush1.msra.mxu0 %v144
    %276 = vmatprep.subr.mxu0 %v147
    %277 = vmatpush1.msra.mxu0 %v146
    %278 = vmatprep.subr.mxu0 %v149
    %279 = vmatpush1.msra.mxu0 %v148
    %280 = vmatprep.subr.mxu0 %v151
    %281 = vmatpush1.msra.mxu0 %v150
    %282 = vmatprep.subr.mxu0 %v153
    %283 = vmatpush1.msra.mxu0 %v152
    %284 = vmatprep.subr.mxu0 0.0
    %285 = vmatpush1.msra.mxu0 0.0
    %286 = vmatprep.subr.mxu0 0.0
    %287 = vmatpush1.msra.mxu0 0.0
    %288 = vmatprep.subr.mxu0 0.0
    %289 = vmatpush1.msra.mxu0 0.0
    %290 = vmatprep.subr.mxu0 0.0
    %291 = vmatpush1.msra.mxu0 0.0
    %292 = vmatprep.subr.mxu0 0.0
    %293 = vmatpush1.msra.mxu0 0.0
    %294 = vmatprep.subr.mxu0 0.0
    %295 = vmatpush1.msra.mxu0 0.0
    %296 = vmatprep.subr.mxu0 0.0
    %297 = vmatpush1.msra.mxu0 0.0
    %298 = vmatprep.subr.mxu0 0.0
    %299 = vmatpush1.msra.mxu0 0.0
    %300 = vmatprep.subr.mxu0 0.0
    %301 = vmatpush1.msra.mxu0 0.0
    %302 = vmatprep.subr.mxu0 0.0
    %303 = vmatpush1.msra.mxu0 0.0
    %304 = vmatprep.subr.mxu0 0.0
    %305 = vmatpush1.msra.mxu0 0.0
    %306 = vmatprep.subr.mxu0 0.0
    %307 = vmatpush1.msra.mxu0 0.0
    %308 = vmatprep.subr.mxu0 0.0
    %309 = vmatpush1.msra.mxu0 0.0
    %310 = vmatprep.subr.mxu0 0.0
    %311 = vmatpush1.msra.mxu0 0.0
    %312 = vmatprep.subr.mxu0 0.0
    %313 = vmatpush1.msra.mxu0 0.0
    %314 = vmatprep.subr.mxu0 0.0
    %315 = vmatpush1.msra.mxu0 0.0
    %316 = vmatprep.subr.mxu0 0.0
    %317 = vmatpush1.msra.mxu0 0.0
    %318 = vmatprep.subr.mxu0 0.0
    %319 = vmatpush1.msra.mxu0 0.0
    %320 = vmatprep.subr.mxu0 0.0
    %321 = vmatpush1.msra.mxu0 0.0
    %322 = vmatprep.subr.mxu0 0.0
    %323 = vmatpush1.msra.mxu0 0.0
    %324 = vmatprep.subr.mxu0 0.0
    %325 = vmatpush1.msra.mxu0 0.0
    %326 = vmatprep.subr.mxu0 0.0
    %327 = vmatpush1.msra.mxu0 0.0
    %328 = vmatprep.subr.mxu0 0.0
    %329 = vmatpush1.msra.mxu0 0.0
    %330 = vmatprep.subr.mxu0 0.0
    %331 = vmatpush1.msra.mxu0 0.0
    %332 = vmatprep.mubr.f32.mxu0 0.0
    %333 = vmatmul.mubr.f32.gmra.mrb[0].mxu0 %v266
    %v334 = vpop.f32.mrb[0].mxu0
    %v335 = vadd.f32 0.0, %v334
    %v336 = vpop.f32.mrb[0].mxu0
    %v337 = vadd.f32 0.0, %v336
    %338 = vdwg.mxu0
    %v341 = vrot.slane %v335, 6
    %v342 = vrot.slane %v337, 6
    %v345 = vadd.f32 %v264, %v341
    %v346 = vadd.f32 %v265, %v342
    %v347 = vxor.u32 %v345, 2147483648
    %v348 = vmul.f32 %v347, 1.442695
    %v349 = vpow.pop %v348
    %v350 = vadd.f32 %v349, 1.0
    %v351 = vrcp.pop %v350
    %v352 = vmul.f32 1.0, %v351
    %v353 = vtanh.pop %v346
    %v354 = vxor.u32 %v346, 2147483648
    %v355 = vmul.f32 %v354, 1.442695
    %v356 = vpow.pop %v355
    %v357 = vadd.f32 %v356, 1.0
    %v358 = vrcp.pop %v357
    %v359 = vmul.f32 1.0, %v358
    %v361 = vrot.slane %v255, 6
    %v363 = vmul.f32 %v352, %v361
    %v364 = vmul.f32 %v352, %v353
    %366 = vrot.lane.b32.xlu0 %v364, 64
    %v367 = vpop.permute.xlu0 %366
    %v369 = vadd.f32 %v363, %v367
    %v370 = vtanh.pop %v369
    %v371 = vmul.f32 %v359, %v370
    %373 = vrot.lane.b32.xlu0 %v371, 64
    %v374 = vpop.permute.xlu0 %373
    %vm376 = vcmask 519170
    %377 = vst.msk [vmem:[#allocation3] sm:$0xc] %vm376, %v374
    %v378 = vld [vmem:[#allocation2] sm:$0x30]
    %v379 = vld [vmem:[#allocation2 + $0x8] sm:$0x30]
    %v380 = vrot.slane %v371, 2
    %381 = vrot.lane.b32.xlu0 %v380, 64
    %v382 = vpop.permute.xlu0 %381
    %v383 = vsel %vm159, %v382, 0
    %385 = vmatprep.subr.mxu0 %v139
    %386 = vmatpush1.msra.mxu0 %v138
    %387 = vmatprep.subr.mxu0 %v141
    %388 = vmatpush1.msra.mxu0 %v140
    %389 = vmatprep.subr.mxu0 %v143
    %390 = vmatpush1.msra.mxu0 %v142
    %391 = vmatprep.subr.mxu0 %v145
    %392 = vmatpush1.msra.mxu0 %v144
    %393 = vmatprep.subr.mxu0 %v147
    %394 = vmatpush1.msra.mxu0 %v146
    %395 = vmatprep.subr.mxu0 %v149
    %396 = vmatpush1.msra.mxu0 %v148
    %397 = vmatprep.subr.mxu0 %v151
    %398 = vmatpush1.msra.mxu0 %v150
    %399 = vmatprep.subr.mxu0 %v153
    %400 = vmatpush1.msra.mxu0 %v152
    %401 = vmatprep.subr.mxu0 0.0
    %402 = vmatpush1.msra.mxu0 0.0
    %403 = vmatprep.subr.mxu0 0.0
    %404 = vmatpush1.msra.mxu0 0.0
    %405 = vmatprep.subr.mxu0 0.0
    %406 = vmatpush1.msra.mxu0 0.0
    %407 = vmatprep.subr.mxu0 0.0
    %408 = vmatpush1.msra.mxu0 0.0
    %409 = vmatprep.subr.mxu0 0.0
    %410 = vmatpush1.msra.mxu0 0.0
    %411 = vmatprep.subr.mxu0 0.0
    %412 = vmatpush1.msra.mxu0 0.0
    %413 = vmatprep.subr.mxu0 0.0
    %414 = vmatpush1.msra.mxu0 0.0
    %415 = vmatprep.subr.mxu0 0.0
    %416 = vmatpush1.msra.mxu0 0.0
    %417 = vmatprep.subr.mxu0 0.0
    %418 = vmatpush1.msra.mxu0 0.0
    %419 = vmatprep.subr.mxu0 0.0
    %420 = vmatpush1.msra.mxu0 0.0
    %421 = vmatprep.subr.mxu0 0.0
    %422 = vmatpush1.msra.mxu0 0.0
    %423 = vmatprep.subr.mxu0 0.0
    %424 = vmatpush1.msra.mxu0 0.0
    %425 = vmatprep.subr.mxu0 0.0
    %426 = vmatpush1.msra.mxu0 0.0
    %427 = vmatprep.subr.mxu0 0.0
    %428 = vmatpush1.msra.mxu0 0.0
    %429 = vmatprep.subr.mxu0 0.0
    %430 = vmatpush1.msra.mxu0 0.0
    %431 = vmatprep.subr.mxu0 0.0
    %432 = vmatpush1.msra.mxu0 0.0
    %433 = vmatprep.subr.mxu0 0.0
    %434 = vmatpush1.msra.mxu0 0.0
    %435 = vmatprep.subr.mxu0 0.0
    %436 = vmatpush1.msra.mxu0 0.0
    %437 = vmatprep.subr.mxu0 0.0
    %438 = vmatpush1.msra.mxu0 0.0
    %439 = vmatprep.subr.mxu0 0.0
    %440 = vmatpush1.msra.mxu0 0.0
    %441 = vmatprep.subr.mxu0 0.0
    %442 = vmatpush1.msra.mxu0 0.0
    %443 = vmatprep.subr.mxu0 0.0
    %444 = vmatpush1.msra.mxu0 0.0
    %445 = vmatprep.subr.mxu0 0.0
    %446 = vmatpush1.msra.mxu0 0.0
    %447 = vmatprep.subr.mxu0 0.0
    %448 = vmatpush1.msra.mxu0 0.0
    %449 = vmatprep.mubr.f32.mxu0 0.0
    %450 = vmatmul.mubr.f32.gmra.mrb[0].mxu0 %v383
    %v451 = vpop.f32.mrb[0].mxu0
    %v452 = vadd.f32 0.0, %v451
    %v453 = vpop.f32.mrb[0].mxu0
    %v454 = vadd.f32 0.0, %v453
    %455 = vdwg.mxu0
    %v458 = vrot.slane %v452, 4
    %v459 = vrot.slane %v454, 4
    %v462 = vadd.f32 %v378, %v458
    %v463 = vadd.f32 %v379, %v459
    %v464 = vxor.u32 %v462, 2147483648
    %v465 = vmul.f32 %v464, 1.442695
    %v466 = vpow.pop %v465
    %v467 = vadd.f32 %v466, 1.0
    %v468 = vrcp.pop %v467
    %v469 = vmul.f32 1.0, %v468
    %v470 = vtanh.pop %v463
    %v471 = vxor.u32 %v463, 2147483648
    %v472 = vmul.f32 %v471, 1.442695
    %v473 = vpow.pop %v472
    %v474 = vadd.f32 %v473, 1.0
    %v475 = vrcp.pop %v474
    %v476 = vmul.f32 1.0, %v475
    %v478 = vrot.slane %v369, 6
    %v480 = vmul.f32 %v469, %v478
    %v481 = vmul.f32 %v469, %v470
    %483 = vrot.lane.b32.xlu0 %v481, 64
    %v484 = vpop.permute.xlu0 %483
    %v486 = vadd.f32 %v480, %v484
    %v487 = vtanh.pop %v486
    %v488 = vmul.f32 %v476, %v487
    %490 = vrot.lane.b32.xlu0 %v488, 64
    %v491 = vpop.permute.xlu0 %490
    %vm493 = vcmask 521220
    %494 = vst.msk [vmem:[#allocation3] sm:$0x30] %vm493, %v491
    %v495 = vld [vmem:[#allocation2] sm:$0xc0]
    %v496 = vld [vmem:[#allocation2 + $0x8] sm:$0xc0]
    %v497 = vrot.slane %v488, 4
    %498 = vrot.lane.b32.xlu0 %v497, 64
    %v499 = vpop.permute.xlu0 %498
    %v500 = vsel %vm159, %v499, 0
    %502 = vmatprep.subr.mxu0 %v139
    %503 = vmatpush1.msra.mxu0 %v138
    %504 = vmatprep.subr.mxu0 %v141
    %505 = vmatpush1.msra.mxu0 %v140
    %506 = vmatprep.subr.mxu0 %v143
    %507 = vmatpush1.msra.mxu0 %v142
    %508 = vmatprep.subr.mxu0 %v145
    %509 = vmatpush1.msra.mxu0 %v144
    %510 = vmatprep.subr.mxu0 %v147
    %511 = vmatpush1.msra.mxu0 %v146
    %512 = vmatprep.subr.mxu0 %v149
    %513 = vmatpush1.msra.mxu0 %v148
    %514 = vmatprep.subr.mxu0 %v151
    %515 = vmatpush1.msra.mxu0 %v150
    %516 = vmatprep.subr.mxu0 %v153
    %517 = vmatpush1.msra.mxu0 %v152
    %518 = vmatprep.subr.mxu0 0.0
    %519 = vmatpush1.msra.mxu0 0.0
    %520 = vmatprep.subr.mxu0 0.0
    %521 = vmatpush1.msra.mxu0 0.0
    %522 = vmatprep.subr.mxu0 0.0
    %523 = vmatpush1.msra.mxu0 0.0
    %524 = vmatprep.subr.mxu0 0.0
    %525 = vmatpush1.msra.mxu0 0.0
    %526 = vmatprep.subr.mxu0 0.0
    %527 = vmatpush1.msra.mxu0 0.0
    %528 = vmatprep.subr.mxu0 0.0
    %529 = vmatpush1.msra.mxu0 0.0
    %530 = vmatprep.subr.mxu0 0.0
    %531 = vmatpush1.msra.mxu0 0.0
    %532 = vmatprep.subr.mxu0 0.0
    %533 = vmatpush1.msra.mxu0 0.0
    %534 = vmatprep.subr.mxu0 0.0
    %535 = vmatpush1.msra.mxu0 0.0
    %536 = vmatprep.subr.mxu0 0.0
    %537 = vmatpush1.msra.mxu0 0.0
    %538 = vmatprep.subr.mxu0 0.0
    %539 = vmatpush1.msra.mxu0 0.0
    %540 = vmatprep.subr.mxu0 0.0
    %541 = vmatpush1.msra.mxu0 0.0
    %542 = vmatprep.subr.mxu0 0.0
    %543 = vmatpush1.msra.mxu0 0.0
    %544 = vmatprep.subr.mxu0 0.0
    %545 = vmatpush1.msra.mxu0 0.0
    %546 = vmatprep.subr.mxu0 0.0
    %547 = vmatpush1.msra.mxu0 0.0
    %548 = vmatprep.subr.mxu0 0.0
    %549 = vmatpush1.msra.mxu0 0.0
    %550 = vmatprep.subr.mxu0 0.0
    %551 = vmatpush1.msra.mxu0 0.0
    %552 = vmatprep.subr.mxu0 0.0
    %553 = vmatpush1.msra.mxu0 0.0
    %554 = vmatprep.subr.mxu0 0.0
    %555 = vmatpush1.msra.mxu0 0.0
    %556 = vmatprep.subr.mxu0 0.0
    %557 = vmatpush1.msra.mxu0 0.0
    %558 = vmatprep.subr.mxu0 0.0
    %559 = vmatpush1.msra.mxu0 0.0
    %560 = vmatprep.subr.mxu0 0.0
    %561 = vmatpush1.msra.mxu0 0.0
    %562 = vmatprep.subr.mxu0 0.0
    %563 = vmatpush1.msra.mxu0 0.0
    %564 = vmatprep.subr.mxu0 0.0
    %565 = vmatpush1.msra.mxu0 0.0
    %566 = vmatprep.mubr.f32.mxu0 0.0
    %567 = vmatmul.mubr.f32.gmra.mrb[0].mxu0 %v500
    %v568 = vpop.f32.mrb[0].mxu0
    %v569 = vadd.f32 0.0, %v568
    %v570 = vpop.f32.mrb[0].mxu0
    %v571 = vadd.f32 0.0, %v570
    %572 = vdwg.mxu0
    %v575 = vrot.slane %v569, 2
    %v576 = vrot.slane %v571, 2
    %v579 = vadd.f32 %v495, %v575
    %v580 = vadd.f32 %v496, %v576
    %v581 = vxor.u32 %v579, 2147483648
    %v582 = vmul.f32 %v581, 1.442695
    %v583 = vpow.pop %v582
    %v584 = vadd.f32 %v583, 1.0
    %v585 = vrcp.pop %v584
    %v586 = vmul.f32 1.0, %v585
    %v587 = vtanh.pop %v580
    %v588 = vxor.u32 %v580, 2147483648
    %v589 = vmul.f32 %v588, 1.442695
    %v590 = vpow.pop %v589
    %v591 = vadd.f32 %v590, 1.0
    %v592 = vrcp.pop %v591
    %v593 = vmul.f32 1.0, %v592
    %v595 = vrot.slane %v486, 6
    %v597 = vmul.f32 %v586, %v595
    %v598 = vmul.f32 %v586, %v587
    %600 = vrot.lane.b32.xlu0 %v598, 64
    %v601 = vpop.permute.xlu0 %600
    %v603 = vadd.f32 %v597, %v601
    %v604 = vtanh.pop %v603
    %v605 = vmul.f32 %v593, %v604
    %607 = vrot.lane.b32.xlu0 %v605, 64
    %v608 = vpop.permute.xlu0 %607
    %vm610 = vcmask 523270
    %611 = vst.msk [vmem:[#allocation3] sm:$0xc0] %vm610, %v608
    %v612 = vld [vmem:[#allocation2 + $0x10] sm:$0x3]
    %v613 = vld [vmem:[#allocation2 + $0x18] sm:$0x3]
    %v614 = vrot.slane %v605, 6
    %615 = vrot.lane.b32.xlu0 %v614, 64
    %v616 = vpop.permute.xlu0 %615
    %v617 = vsel %vm159, %v616, 0
    %619 = vmatprep.subr.mxu0 %v139
    %620 = vmatpush1.msra.mxu0 %v138
    %621 = vmatprep.subr.mxu0 %v141
    %622 = vmatpush1.msra.mxu0 %v140
    %623 = vmatprep.subr.mxu0 %v143
    %624 = vmatpush1.msra.mxu0 %v142
    %625 = vmatprep.subr.mxu0 %v145
    %626 = vmatpush1.msra.mxu0 %v144
    %627 = vmatprep.subr.mxu0 %v147
    %628 = vmatpush1.msra.mxu0 %v146
    %629 = vmatprep.subr.mxu0 %v149
    %630 = vmatpush1.msra.mxu0 %v148
    %631 = vmatprep.subr.mxu0 %v151
    %632 = vmatpush1.msra.mxu0 %v150
    %633 = vmatprep.subr.mxu0 %v153
    %634 = vmatpush1.msra.mxu0 %v152
    %635 = vmatprep.subr.mxu0 0.0
    %636 = vmatpush1.msra.mxu0 0.0
    %637 = vmatprep.subr.mxu0 0.0
    %638 = vmatpush1.msra.mxu0 0.0
    %639 = vmatprep.subr.mxu0 0.0
    %640 = vmatpush1.msra.mxu0 0.0
    %641 = vmatprep.subr.mxu0 0.0
    %642 = vmatpush1.msra.mxu0 0.0
    %643 = vmatprep.subr.mxu0 0.0
    %644 = vmatpush1.msra.mxu0 0.0
    %645 = vmatprep.subr.mxu0 0.0
    %646 = vmatpush1.msra.mxu0 0.0
    %647 = vmatprep.subr.mxu0 0.0
    %648 = vmatpush1.msra.mxu0 0.0
    %649 = vmatprep.subr.mxu0 0.0
    %650 = vmatpush1.msra.mxu0 0.0
    %651 = vmatprep.subr.mxu0 0.0
    %652 = vmatpush1.msra.mxu0 0.0
    %653 = vmatprep.subr.mxu0 0.0
    %654 = vmatpush1.msra.mxu0 0.0
    %655 = vmatprep.subr.mxu0 0.0
    %656 = vmatpush1.msra.mxu0 0.0
    %657 = vmatprep.subr.mxu0 0.0
    %658 = vmatpush1.msra.mxu0 0.0
    %659 = vmatprep.subr.mxu0 0.0
    %660 = vmatpush1.msra.mxu0 0.0
    %661 = vmatprep.subr.mxu0 0.0
    %662 = vmatpush1.msra.mxu0 0.0
    %663 = vmatprep.subr.mxu0 0.0
    %664 = vmatpush1.msra.mxu0 0.0
    %665 = vmatprep.subr.mxu0 0.0
    %666 = vmatpush1.msra.mxu0 0.0
    %667 = vmatprep.subr.mxu0 0.0
    %668 = vmatpush1.msra.mxu0 0.0
    %669 = vmatprep.subr.mxu0 0.0
    %670 = vmatpush1.msra.mxu0 0.0
    %671 = vmatprep.subr.mxu0 0.0
    %672 = vmatpush1.msra.mxu0 0.0
    %673 = vmatprep.subr.mxu0 0.0
    %674 = vmatpush1.msra.mxu0 0.0
    %675 = vmatprep.subr.mxu0 0.0
    %676 = vmatpush1.msra.mxu0 0.0
    %677 = vmatprep.subr.mxu0 0.0
    %678 = vmatpush1.msra.mxu0 0.0
    %679 = vmatprep.subr.mxu0 0.0
    %680 = vmatpush1.msra.mxu0 0.0
    %681 = vmatprep.subr.mxu0 0.0
    %682 = vmatpush1.msra.mxu0 0.0
    %683 = vmatprep.mubr.f32.mxu0 0.0
    %684 = vmatmul.mubr.f32.gmra.mrb[0].mxu0 %v617
    %v685 = vpop.f32.mrb[0].mxu0
    %v686 = vadd.f32 0.0, %v685
    %v687 = vpop.f32.mrb[0].mxu0
    %v688 = vadd.f32 0.0, %v687
    %689 = vdwg.mxu0
    %v690 = vadd.f32 %v612, %v686
    %v691 = vadd.f32 %v613, %v688
    %v692 = vxor.u32 %v690, 2147483648
    %v693 = vmul.f32 %v692, 1.442695
    %v694 = vpow.pop %v693
    %v695 = vadd.f32 %v694, 1.0
    %v696 = vrcp.pop %v695
    %v697 = vmul.f32 1.0, %v696
    %v698 = vtanh.pop %v691
    %v699 = vxor.u32 %v691, 2147483648
    %v700 = vmul.f32 %v699, 1.442695
    %v701 = vpow.pop %v700
    %v702 = vadd.f32 %v701, 1.0
    %v703 = vrcp.pop %v702
    %v704 = vmul.f32 1.0, %v703
    %v706 = vrot.slane %v603, 6
    %v708 = vmul.f32 %v697, %v706
    %v709 = vmul.f32 %v697, %v698
    %711 = vrot.lane.b32.xlu0 %v709, 64
    %v712 = vpop.permute.xlu0 %711
    %v714 = vadd.f32 %v708, %v712
    %v715 = vtanh.pop %v714
    %v716 = vmul.f32 %v704, %v715
    %718 = vrot.lane.b32.xlu0 %v716, 64
    %v719 = vpop.permute.xlu0 %718
    %721 = vst.msk [vmem:[#allocation3 + $0x8] sm:$0x3] %vm262, %v719
    %v722 = vld [vmem:[#allocation2 + $0x10] sm:$0xc]
    %v723 = vld [vmem:[#allocation2 + $0x18] sm:$0xc]
    %v724 = vsel %vm159, %v719, 0
    %726 = vmatprep.subr.mxu0 %v139
    %727 = vmatpush1.msra.mxu0 %v138
    %728 = vmatprep.subr.mxu0 %v141
    %729 = vmatpush1.msra.mxu0 %v140
    %730 = vmatprep.subr.mxu0 %v143
    %731 = vmatpush1.msra.mxu0 %v142
    %732 = vmatprep.subr.mxu0 %v145
    %733 = vmatpush1.msra.mxu0 %v144
    %734 = vmatprep.subr.mxu0 %v147
    %735 = vmatpush1.msra.mxu0 %v146
    %736 = vmatprep.subr.mxu0 %v149
    %737 = vmatpush1.msra.mxu0 %v148
    %738 = vmatprep.subr.mxu0 %v151
    %739 = vmatpush1.msra.mxu0 %v150
    %740 = vmatprep.subr.mxu0 %v153
    %741 = vmatpush1.msra.mxu0 %v152
    %742 = vmatprep.subr.mxu0 0.0
    %743 = vmatpush1.msra.mxu0 0.0
    %744 = vmatprep.subr.mxu0 0.0
    %745 = vmatpush1.msra.mxu0 0.0
    %746 = vmatprep.subr.mxu0 0.0
    %747 = vmatpush1.msra.mxu0 0.0
    %748 = vmatprep.subr.mxu0 0.0
    %749 = vmatpush1.msra.mxu0 0.0
    %750 = vmatprep.subr.mxu0 0.0
    %751 = vmatpush1.msra.mxu0 0.0
    %752 = vmatprep.subr.mxu0 0.0
    %753 = vmatpush1.msra.mxu0 0.0
    %754 = vmatprep.subr.mxu0 0.0
    %755 = vmatpush1.msra.mxu0 0.0
    %756 = vmatprep.subr.mxu0 0.0
    %757 = vmatpush1.msra.mxu0 0.0
    %758 = vmatprep.subr.mxu0 0.0
    %759 = vmatpush1.msra.mxu0 0.0
    %760 = vmatprep.subr.mxu0 0.0
    %761 = vmatpush1.msra.mxu0 0.0
    %762 = vmatprep.subr.mxu0 0.0
    %763 = vmatpush1.msra.mxu0 0.0
    %764 = vmatprep.subr.mxu0 0.0
    %765 = vmatpush1.msra.mxu0 0.0
    %766 = vmatprep.subr.mxu0 0.0
    %767 = vmatpush1.msra.mxu0 0.0
    %768 = vmatprep.subr.mxu0 0.0
    %769 = vmatpush1.msra.mxu0 0.0
    %770 = vmatprep.subr.mxu0 0.0
    %771 = vmatpush1.msra.mxu0 0.0
    %772 = vmatprep.subr.mxu0 0.0
    %773 = vmatpush1.msra.mxu0 0.0
    %774 = vmatprep.subr.mxu0 0.0
    %775 = vmatpush1.msra.mxu0 0.0
    %776 = vmatprep.subr.mxu0 0.0
    %777 = vmatpush1.msra.mxu0 0.0
    %778 = vmatprep.subr.mxu0 0.0
    %779 = vmatpush1.msra.mxu0 0.0
    %780 = vmatprep.subr.mxu0 0.0
    %781 = vmatpush1.msra.mxu0 0.0
    %782 = vmatprep.subr.mxu0 0.0
    %783 = vmatpush1.msra.mxu0 0.0
    %784 = vmatprep.subr.mxu0 0.0
    %785 = vmatpush1.msra.mxu0 0.0
    %786 = vmatprep.subr.mxu0 0.0
    %787 = vmatpush1.msra.mxu0 0.0
    %788 = vmatprep.subr.mxu0 0.0
    %789 = vmatpush1.msra.mxu0 0.0
    %790 = vmatprep.mubr.f32.mxu0 0.0
    %791 = vmatmul.mubr.f32.gmra.mrb[0].mxu0 %v724
    %v792 = vpop.f32.mrb[0].mxu0
    %v793 = vadd.f32 0.0, %v792
    %v794 = vpop.f32.mrb[0].mxu0
    %v795 = vadd.f32 0.0, %v794
    %796 = vdwg.mxu0
    %v799 = vrot.slane %v793, 6
    %v800 = vrot.slane %v795, 6
    %v803 = vadd.f32 %v722, %v799
    %v804 = vadd.f32 %v723, %v800
    %v805 = vxor.u32 %v803, 2147483648
    %v806 = vmul.f32 %v805, 1.442695
    %v807 = vpow.pop %v806
    %v808 = vadd.f32 %v807, 1.0
    %v809 = vrcp.pop %v808
    %v810 = vmul.f32 1.0, %v809
    %v811 = vtanh.pop %v804
    %v812 = vxor.u32 %v804, 2147483648
    %v813 = vmul.f32 %v812, 1.442695
    %v814 = vpow.pop %v813
    %v815 = vadd.f32 %v814, 1.0
    %v816 = vrcp.pop %v815
    %v817 = vmul.f32 1.0, %v816
    %v819 = vrot.slane %v714, 6
    %v821 = vmul.f32 %v810, %v819
    %v822 = vmul.f32 %v810, %v811
    %824 = vrot.lane.b32.xlu0 %v822, 64
    %v825 = vpop.permute.xlu0 %824
    %v827 = vadd.f32 %v821, %v825
    %v828 = vtanh.pop %v827
    %v829 = vmul.f32 %v817, %v828
    %831 = vrot.lane.b32.xlu0 %v829, 64
    %v832 = vpop.permute.xlu0 %831
    %834 = vst.msk [vmem:[#allocation3 + $0x8] sm:$0xc] %vm376, %v832
    %v835 = vld [vmem:[#allocation2 + $0x10] sm:$0x30]
    %v836 = vld [vmem:[#allocation2 + $0x18] sm:$0x30]
    %v837 = vrot.slane %v829, 2
    %838 = vrot.lane.b32.xlu0 %v837, 64
    %v839 = vpop.permute.xlu0 %838
    %v840 = vsel %vm159, %v839, 0
    %842 = vmatprep.subr.mxu0 %v139
    %843 = vmatpush1.msra.mxu0 %v138
    %844 = vmatprep.subr.mxu0 %v141
    %845 = vmatpush1.msra.mxu0 %v140
    %846 = vmatprep.subr.mxu0 %v143
    %847 = vmatpush1.msra.mxu0 %v142
    %848 = vmatprep.subr.mxu0 %v145
    %849 = vmatpush1.msra.mxu0 %v144
    %850 = vmatprep.subr.mxu0 %v147
    %851 = vmatpush1.msra.mxu0 %v146
    %852 = vmatprep.subr.mxu0 %v149
    %853 = vmatpush1.msra.mxu0 %v148
    %854 = vmatprep.subr.mxu0 %v151
    %855 = vmatpush1.msra.mxu0 %v150
    %856 = vmatprep.subr.mxu0 %v153
    %857 = vmatpush1.msra.mxu0 %v152
    %858 = vmatprep.subr.mxu0 0.0
    %859 = vmatpush1.msra.mxu0 0.0
    %860 = vmatprep.subr.mxu0 0.0
    %861 = vmatpush1.msra.mxu0 0.0
    %862 = vmatprep.subr.mxu0 0.0
    %863 = vmatpush1.msra.mxu0 0.0
    %864 = vmatprep.subr.mxu0 0.0
    %865 = vmatpush1.msra.mxu0 0.0
    %866 = vmatprep.subr.mxu0 0.0
    %867 = vmatpush1.msra.mxu0 0.0
    %868 = vmatprep.subr.mxu0 0.0
    %869 = vmatpush1.msra.mxu0 0.0
    %870 = vmatprep.subr.mxu0 0.0
    %871 = vmatpush1.msra.mxu0 0.0
    %872 = vmatprep.subr.mxu0 0.0
    %873 = vmatpush1.msra.mxu0 0.0
    %874 = vmatprep.subr.mxu0 0.0
    %875 = vmatpush1.msra.mxu0 0.0
    %876 = vmatprep.subr.mxu0 0.0
    %877 = vmatpush1.msra.mxu0 0.0
    %878 = vmatprep.subr.mxu0 0.0
    %879 = vmatpush1.msra.mxu0 0.0
    %880 = vmatprep.subr.mxu0 0.0
    %881 = vmatpush1.msra.mxu0 0.0
    %882 = vmatprep.subr.mxu0 0.0
    %883 = vmatpush1.msra.mxu0 0.0
    %884 = vmatprep.subr.mxu0 0.0
    %885 = vmatpush1.msra.mxu0 0.0
    %886 = vmatprep.subr.mxu0 0.0
    %887 = vmatpush1.msra.mxu0 0.0
    %888 = vmatprep.subr.mxu0 0.0
    %889 = vmatpush1.msra.mxu0 0.0
    %890 = vmatprep.subr.mxu0 0.0
    %891 = vmatpush1.msra.mxu0 0.0
    %892 = vmatprep.subr.mxu0 0.0
    %893 = vmatpush1.msra.mxu0 0.0
    %894 = vmatprep.subr.mxu0 0.0
    %895 = vmatpush1.msra.mxu0 0.0
    %896 = vmatprep.subr.mxu0 0.0
    %897 = vmatpush1.msra.mxu0 0.0
    %898 = vmatprep.subr.mxu0 0.0
    %899 = vmatpush1.msra.mxu0 0.0
    %900 = vmatprep.subr.mxu0 0.0
    %901 = vmatpush1.msra.mxu0 0.0
    %902 = vmatprep.subr.mxu0 0.0
    %903 = vmatpush1.msra.mxu0 0.0
    %904 = vmatprep.subr.mxu0 0.0
    %905 = vmatpush1.msra.mxu0 0.0
    %906 = vmatprep.mubr.f32.mxu0 0.0
    %907 = vmatmul.mubr.f32.gmra.mrb[0].mxu0 %v840
    %v908 = vpop.f32.mrb[0].mxu0
    %v909 = vadd.f32 0.0, %v908
    %v910 = vpop.f32.mrb[0].mxu0
    %v911 = vadd.f32 0.0, %v910
    %912 = vdwg.mxu0
    %v915 = vrot.slane %v909, 4
    %v916 = vrot.slane %v911, 4
    %v919 = vadd.f32 %v835, %v915
    %v920 = vadd.f32 %v836, %v916
    %v921 = vxor.u32 %v919, 2147483648
    %v922 = vmul.f32 %v921, 1.442695
    %v923 = vpow.pop %v922
    %v924 = vadd.f32 %v923, 1.0
    %v925 = vrcp.pop %v924
    %v926 = vmul.f32 1.0, %v925
    %v927 = vtanh.pop %v920
    %v928 = vxor.u32 %v920, 2147483648
    %v929 = vmul.f32 %v928, 1.442695
    %v930 = vpow.pop %v929
    %v931 = vadd.f32 %v930, 1.0
    %v932 = vrcp.pop %v931
    %v933 = vmul.f32 1.0, %v932
    %v935 = vrot.slane %v827, 6
    %v937 = vmul.f32 %v926, %v935
    %v938 = vmul.f32 %v926, %v927
    %940 = vrot.lane.b32.xlu0 %v938, 64
    %v941 = vpop.permute.xlu0 %940
    %v943 = vadd.f32 %v937, %v941
    %v944 = vtanh.pop %v943
    %v945 = vmul.f32 %v933, %v944
    %947 = vrot.lane.b32.xlu0 %v945, 64
    %v948 = vpop.permute.xlu0 %947
    %950 = vst.msk [vmem:[#allocation3 + $0x8] sm:$0x30] %vm493, %v948
    %v951 = vld [vmem:[#allocation2 + $0x10] sm:$0xc0]
    %v952 = vld [vmem:[#allocation2 + $0x18] sm:$0xc0]
    %v953 = vrot.slane %v945, 4
    %954 = vrot.lane.b32.xlu0 %v953, 64
    %v955 = vpop.permute.xlu0 %954
    %v956 = vsel %vm159, %v955, 0
    %958 = vmatprep.subr.mxu0 %v139
    %959 = vmatpush1.msra.mxu0 %v138
    %960 = vmatprep.subr.mxu0 %v141
    %961 = vmatpush1.msra.mxu0 %v140
    %962 = vmatprep.subr.mxu0 %v143
    %963 = vmatpush1.msra.mxu0 %v142
    %964 = vmatprep.subr.mxu0 %v145
    %965 = vmatpush1.msra.mxu0 %v144
    %966 = vmatprep.subr.mxu0 %v147
    %967 = vmatpush1.msra.mxu0 %v146
    %968 = vmatprep.subr.mxu0 %v149
    %969 = vmatpush1.msra.mxu0 %v148
    %970 = vmatprep.subr.mxu0 %v151
    %971 = vmatpush1.msra.mxu0 %v150
    %972 = vmatprep.subr.mxu0 %v153
    %973 = vmatpush1.msra.mxu0 %v152
    %974 = vmatprep.subr.mxu0 0.0
    %975 = vmatpush1.msra.mxu0 0.0
    %976 = vmatprep.subr.mxu0 0.0
    %977 = vmatpush1.msra.mxu0 0.0
    %978 = vmatprep.subr.mxu0 0.0
    %979 = vmatpush1.msra.mxu0 0.0
    %980 = vmatprep.subr.mxu0 0.0
    %981 = vmatpush1.msra.mxu0 0.0
    %982 = vmatprep.subr.mxu0 0.0
    %983 = vmatpush1.msra.mxu0 0.0
    %984 = vmatprep.subr.mxu0 0.0
    %985 = vmatpush1.msra.mxu0 0.0
    %986 = vmatprep.subr.mxu0 0.0
    %987 = vmatpush1.msra.mxu0 0.0
    %988 = vmatprep.subr.mxu0 0.0
    %989 = vmatpush1.msra.mxu0 0.0
    %990 = vmatprep.subr.mxu0 0.0
    %991 = vmatpush1.msra.mxu0 0.0
    %992 = vmatprep.subr.mxu0 0.0
    %993 = vmatpush1.msra.mxu0 0.0
    %994 = vmatprep.subr.mxu0 0.0
    %995 = vmatpush1.msra.mxu0 0.0
    %996 = vmatprep.subr.mxu0 0.0
    %997 = vmatpush1.msra.mxu0 0.0
    %998 = vmatprep.subr.mxu0 0.0
    %999 = vmatpush1.msra.mxu0 0.0
    %1000 = vmatprep.subr.mxu0 0.0
    %1001 = vmatpush1.msra.mxu0 0.0
    %1002 = vmatprep.subr.mxu0 0.0
    %1003 = vmatpush1.msra.mxu0 0.0
    %1004 = vmatprep.subr.mxu0 0.0
    %1005 = vmatpush1.msra.mxu0 0.0
    %1006 = vmatprep.subr.mxu0 0.0
    %1007 = vmatpush1.msra.mxu0 0.0
    %1008 = vmatprep.subr.mxu0 0.0
    %1009 = vmatpush1.msra.mxu0 0.0
    %1010 = vmatprep.subr.mxu0 0.0
    %1011 = vmatpush1.msra.mxu0 0.0
    %1012 = vmatprep.subr.mxu0 0.0
    %1013 = vmatpush1.msra.mxu0 0.0
    %1014 = vmatprep.subr.mxu0 0.0
    %1015 = vmatpush1.msra.mxu0 0.0
    %1016 = vmatprep.subr.mxu0 0.0
    %1017 = vmatpush1.msra.mxu0 0.0
    %1018 = vmatprep.subr.mxu0 0.0
    %1019 = vmatpush1.msra.mxu0 0.0
    %1020 = vmatprep.subr.mxu0 0.0
    %1021 = vmatpush1.msra.mxu0 0.0
    %1022 = vmatprep.mubr.f32.mxu0 0.0
    %1023 = vmatmul.mubr.f32.gmra.mrb[0].mxu0 %v956
    %v1024 = vpop.f32.mrb[0].mxu0
    %v1025 = vadd.f32 0.0, %v1024
    %v1026 = vpop.f32.mrb[0].mxu0
    %v1027 = vadd.f32 0.0, %v1026
    %1028 = vdwg.mxu0
    %v1031 = vrot.slane %v1025, 2
    %v1032 = vrot.slane %v1027, 2
    %v1035 = vadd.f32 %v951, %v1031
    %v1036 = vadd.f32 %v952, %v1032
    %v1037 = vxor.u32 %v1035, 2147483648
    %v1038 = vmul.f32 %v1037, 1.442695
    %v1039 = vpow.pop %v1038
    %v1040 = vadd.f32 %v1039, 1.0
    %v1041 = vrcp.pop %v1040
    %v1042 = vmul.f32 1.0, %v1041
    %v1043 = vtanh.pop %v1036
    %v1044 = vxor.u32 %v1036, 2147483648
    %v1045 = vmul.f32 %v1044, 1.442695
    %v1046 = vpow.pop %v1045
    %v1047 = vadd.f32 %v1046, 1.0
    %v1048 = vrcp.pop %v1047
    %v1049 = vmul.f32 1.0, %v1048
    %v1051 = vrot.slane %v943, 6
    %v1053 = vmul.f32 %v1042, %v1051
    %v1054 = vmul.f32 %v1042, %v1043
    %1056 = vrot.lane.b32.xlu0 %v1054, 64
    %v1057 = vpop.permute.xlu0 %1056
    %v1059 = vadd.f32 %v1053, %v1057
    %v1060 = vtanh.pop %v1059
    %v1061 = vmul.f32 %v1049, %v1060
    %1063 = vrot.lane.b32.xlu0 %v1061, 64
    %v1064 = vpop.permute.xlu0 %1063
    %1066 = vst.msk [vmem:[#allocation3 + $0x8] sm:$0xc0] %vm610, %v1064
    %v1067 = vld [vmem:[#allocation3] sm:$0xff]
    %v1068 = vld [vmem:[#allocation3 + $0x8] sm:$0xff]
    %v1069 = vld [vmem:[%s3] sm:$0xff]
    %v1070 = vld [vmem:[%s3 + $0x8] sm:$0xff]
    %v1071 = vld [vmem:[%s3 + $0x10] sm:$0xff]
    %v1072 = vld [vmem:[%s3 + $0x18] sm:$0xff]
    %v1073 = vld [vmem:[%s3 + $0x20] sm:$0xff]
    %v1074 = vld [vmem:[%s3 + $0x28] sm:$0xff]
    %v1075 = vld [vmem:[%s3 + $0x30] sm:$0xff]
    %v1076 = vld [vmem:[%s3 + $0x38] sm:$0xff]
    %v1077 = vld [vmem:[%s3 + $0x40] sm:$0xff]
    %v1078 = vld [vmem:[%s3 + $0x48] sm:$0xff]
    %v1079 = vld [vmem:[%s3 + $0x50] sm:$0xff]
    %v1080 = vld [vmem:[%s3 + $0x58] sm:$0xff]
    %v1081 = vld [vmem:[%s3 + $0x60] sm:$0xff]
    %v1082 = vld [vmem:[%s3 + $0x68] sm:$0xff]
    %v1083 = vld [vmem:[%s3 + $0x70] sm:$0xff]
    %v1084 = vld [vmem:[%s3 + $0x78] sm:$0xff]
    %v1085 = vld [vmem:[%s3 + $0x80] sm:$0x1]
    %v1086 = vld [vmem:[%s3 + $0x88] sm:$0x1]
    %vm1087 = vcmask 531456
    %v1089 = vsel %vm1087, %v1067, 0
    %v1092 = vsel %vm1087, %v1068, 0
    %vm1094 = vcmask 1040384
    %v1096 = vsel %vm1094, %v1085, 0
    %v1099 = vsel %vm1094, %v1086, 0
    %1101 = vmatprep.subr.mxu0 %v1070
    %1102 = vmatpush1.msra.mxu0 %v1069
    %1103 = vmatprep.subr.mxu0 %v1072
    %1104 = vmatpush1.msra.mxu0 %v1071
    %1105 = vmatprep.subr.mxu0 %v1074
    %1106 = vmatpush1.msra.mxu0 %v1073
    %1107 = vmatprep.subr.mxu0 %v1076
    %1108 = vmatpush1.msra.mxu0 %v1075
    %1109 = vmatprep.subr.mxu0 %v1078
    %1110 = vmatpush1.msra.mxu0 %v1077
    %1111 = vmatprep.subr.mxu0 %v1080
    %1112 = vmatpush1.msra.mxu0 %v1079
    %1113 = vmatprep.subr.mxu0 %v1082
    %1114 = vmatpush1.msra.mxu0 %v1081
    %1115 = vmatprep.subr.mxu0 %v1084
    %1116 = vmatpush1.msra.mxu0 %v1083
    %1117 = vmatprep.subr.mxu0 %v1099
    %1118 = vmatpush1.msra.mxu0 %v1096
    %1119 = vmatprep.subr.mxu0 0.0
    %1120 = vmatpush1.msra.mxu0 0.0
    %1121 = vmatprep.subr.mxu0 0.0
    %1122 = vmatpush1.msra.mxu0 0.0
    %1123 = vmatprep.subr.mxu0 0.0
    %1124 = vmatpush1.msra.mxu0 0.0
    %1125 = vmatprep.subr.mxu0 0.0
    %1126 = vmatpush1.msra.mxu0 0.0
    %1127 = vmatprep.subr.mxu0 0.0
    %1128 = vmatpush1.msra.mxu0 0.0
    %1129 = vmatprep.subr.mxu0 0.0
    %1130 = vmatpush1.msra.mxu0 0.0
    %1131 = vmatprep.subr.mxu0 0.0
    %1132 = vmatpush1.msra.mxu0 0.0
    %1133 = vmatprep.subr.mxu0 0.0
    %1134 = vmatpush1.msra.mxu0 0.0
    %1135 = vmatprep.subr.mxu0 0.0
    %1136 = vmatpush1.msra.mxu0 0.0
    %1137 = vmatprep.subr.mxu0 0.0
    %1138 = vmatpush1.msra.mxu0 0.0
    %1139 = vmatprep.subr.mxu0 0.0
    %1140 = vmatpush1.msra.mxu0 0.0
    %1141 = vmatprep.subr.mxu0 0.0
    %1142 = vmatpush1.msra.mxu0 0.0
    %1143 = vmatprep.subr.mxu0 0.0
    %1144 = vmatpush1.msra.mxu0 0.0
    %1145 = vmatprep.subr.mxu0 0.0
    %1146 = vmatpush1.msra.mxu0 0.0
    %1147 = vmatprep.subr.mxu0 0.0
    %1148 = vmatpush1.msra.mxu0 0.0
    %1149 = vmatprep.subr.mxu0 0.0
    %1150 = vmatpush1.msra.mxu0 0.0
    %1151 = vmatprep.subr.mxu0 0.0
    %1152 = vmatpush1.msra.mxu0 0.0
    %1153 = vmatprep.subr.mxu0 0.0
    %1154 = vmatpush1.msra.mxu0 0.0
    %1155 = vmatprep.subr.mxu0 0.0
    %1156 = vmatpush1.msra.mxu0 0.0
    %1157 = vmatprep.subr.mxu0 0.0
    %1158 = vmatpush1.msra.mxu0 0.0
    %1159 = vmatprep.subr.mxu0 0.0
    %1160 = vmatpush1.msra.mxu0 0.0
    %1161 = vmatprep.subr.mxu0 0.0
    %1162 = vmatpush1.msra.mxu0 0.0
    %1163 = vmatprep.subr.mxu0 0.0
    %1164 = vmatpush1.msra.mxu0 0.0
    %1165 = vmatprep.mubr.f32.mxu0 0.0
    %1166 = vmatmul.mubr.f32.gmra.mrb[0].mxu0 %v1089
    %v1167 = vpop.f32.mrb[0].mxu0
    %v1168 = vadd.f32 0.0, %v1167
    %v1169 = vpop.f32.mrb[0].mxu0
    %v1170 = vadd.f32 0.0, %v1169
    %1171 = vmatprep.mubr.f32.mxu0 0.0
    %1172 = vmatmul.mubr.f32.gmra.mrb[0].mxu0 %v1092
    %v1173 = vpop.f32.mrb[0].mxu0
    %v1174 = vadd.f32 0.0, %v1173
    %v1175 = vpop.f32.mrb[0].mxu0
    %v1176 = vadd.f32 0.0, %v1175
    %1177 = vdwg.mxu0
    %v1178 = vlaneseq
    %v1179 = vand.u32 %v1178, 127
    %vm1180 = vcmp.lt.s32.totalorder %v1179, 64
    %v1181 = vsel %vm1180, %v1168, -1e+30
    %v1182 = vsel %vm1180, %v1174, -1e+30
    %1183 = vmax.xlane.f32.xlu0 %v1181
    %v1184 = vpop.xlane.xlu0 %1183
    %1185 = vmax.xlane.f32.xlu0 %v1182
    %v1186 = vpop.xlane.xlu0 %1185
    %v1187 = vsub.f32 %v1181, %v1184
    %v1188 = vsub.f32 %v1182, %v1186
    %v1189 = vmul.f32 %v1187, 1.442695
    %v1190 = vpow.pop %v1189
    %v1191 = vmul.f32 %v1188, 1.442695
    %v1192 = vpow.pop %v1191
    %1193 = vadd.xlane.f32.xlu0 %v1190
    %v1194 = vpop.xlane.xlu0 %1193
    %1195 = vadd.xlane.f32.xlu0 %v1192
    %v1196 = vpop.xlane.xlu0 %1195
    %v1197 = vlog2.pop %v1194
    %v1198 = vmul.f32 %v1197, 0.6931472
    %v1199 = vlog2.pop %v1196
    %v1200 = vmul.f32 %v1199, 0.6931472
    %v1201 = vadd.f32 %v1198, %v1184
    %v1202 = vadd.f32 %v1200, %v1186
    %v1203 = vsub.f32 %v1181, %v1201
    %v1204 = vsub.f32 %v1182, %v1202
    %v1205 = vsel %vm1180, %v1170, -1e+30
    %v1206 = vsel %vm1180, %v1176, -1e+30
    %1207 = vmax.xlane.f32.xlu0 %v1205
    %v1208 = vpop.xlane.xlu0 %1207
    %1209 = vmax.xlane.f32.xlu0 %v1206
    %v1210 = vpop.xlane.xlu0 %1209
    %v1211 = vsub.f32 %v1205, %v1208
    %v1212 = vsub.f32 %v1206, %v1210
    %v1213 = vmul.f32 %v1211, 1.442695
    %v1214 = vpow.pop %v1213
    %v1215 = vmul.f32 %v1212, 1.442695
    %v1216 = vpow.pop %v1215
    %1217 = vadd.xlane.f32.xlu0 %v1214
    %v1218 = vpop.xlane.xlu0 %1217
    %1219 = vadd.xlane.f32.xlu0 %v1216
    %v1220 = vpop.xlane.xlu0 %1219
    %v1221 = vlog2.pop %v1218
    %v1222 = vmul.f32 %v1221, 0.6931472
    %v1223 = vlog2.pop %v1220
    %v1224 = vmul.f32 %v1223, 0.6931472
    %v1225 = vadd.f32 %v1222, %v1208
    %v1226 = vadd.f32 %v1224, %v1210
    %v1227 = vsub.f32 %v1205, %v1225
    %v1228 = vsub.f32 %v1206, %v1226
    %1229 = vst [vmem:[%s5] sm:$0xff] %v1203
    %1230 = vst [vmem:[%s5 + $0x8] sm:$0xff] %v1227
    %1231 = vst [vmem:[%s5 + $0x10] sm:$0xff] %v1204
    %1232 = vst [vmem:[%s5 + $0x18] sm:$0xff] %v1228
    %v1233 = vld [vmem:[%s4] sm:$0xff]
    %v1234 = vld [vmem:[%s4 + $0x8] sm:$0xff]
    %1235 = vset.pattern.permute.xlu0 0
    %1236 = vperm.xlu0 %1235, %v1233
    %v1237 = vpop.permute.xlu0 %1236
    %1238 = vset.pattern.permute.xlu0 0
    %1239 = vperm.xlu0 %1238, %v1234
    %v1240 = vpop.permute.xlu0 %1239
    %vm1241 = vcmp.eq.s32.totalorder %v1179, %v1237
    %vm1242 = vcmp.eq.s32.totalorder %v1179, %v1240
    %v1243 = vsel %vm1241, %v1203, 0.0
    %v1244 = vsel %vm1242, %v1204, 0.0
    %1245 = vset.pattern.permute.xlu0 1
    %1246 = vperm.xlu0 %1245, %v1233
    %v1247 = vpop.permute.xlu0 %1246
    %1248 = vset.pattern.permute.xlu0 1
    %1249 = vperm.xlu0 %1248, %v1234
    %v1250 = vpop.permute.xlu0 %1249
    %vm1251 = vcmp.eq.s32.totalorder %v1179, %v1247
    %vm1252 = vcmp.eq.s32.totalorder %v1179, %v1250
    %v1253 = vsel %vm1251, %v1227, 0.0
    %v1254 = vsel %vm1252, %v1228, 0.0
    %v1255 = vadd.f32 %v1243, %v1244
    %1256 = vadd.xlane.f32.xlu0 %v1255
    %v1257 = vpop.xlane.xlu0 %1256
    %v1258 = vrot.slane %v1257, 4
    %v1259 = vadd.f32 %v1257, %v1258
    %v1260 = vrot.slane %v1259, 2
    %v1261 = vadd.f32 %v1259, %v1260
    %v1262 = vrot.slane %v1261, 1
    %v1263 = vadd.f32 %v1261, %v1262
    %s1264 = vtos %v1263
    %v1265 = vadd.f32 %v1253, %v1254
    %1266 = vadd.xlane.f32.xlu0 %v1265
    %v1267 = vpop.xlane.xlu0 %1266
    %v1268 = vrot.slane %v1267, 4
    %v1269 = vadd.f32 %v1267, %v1268
    %v1270 = vrot.slane %v1269, 2
    %v1271 = vadd.f32 %v1269, %v1270
    %v1272 = vrot.slane %v1271, 1
    %v1273 = vadd.f32 %v1271, %v1272
    %s1274 = vtos %v1273
    %s1275 = sadd.f32 %s1264, %s1274
    %s1276 = ssub.f32 0.0, %s1275
    %v1277 = vstv %s1276
    %vm1278 = vcmask 0
    %1279 = vst.msk [vmem:[#allocation4] sm:$0x1] %vm1278, %v1277
    // Predicated region
    $region22: #{lstm_bilm_forward.1} parent=1 // pred_check
      _
    $region23: #{lstm_bilm_forward.1} parent=1 // pred_check_branch
      %1281 = sbr.rel (0) target = $region25
    $region24: #{lstm_bilm_forward.1} parent=1 // pred_region
      _
    $region25: #{lstm_bilm_forward.1} parent=1 // pred_fallthru
      _
    // Predicated region
    $region26: #{lstm_bilm_forward.1} parent=1 // pred_check
      _
    $region27: #{lstm_bilm_forward.1} parent=1 // pred_check_branch
      %1283 = sbr.rel (0) target = $region29
    $region28: #{lstm_bilm_forward.1} parent=1 // pred_region
      %s1285 = ssub.s32 16, 16
      %1286 = vsyncadd [#allocation5], %s1285
      %s1288 = sshll.u32 [#allocation4], 4
      %s1289 = int_to_ptr.vmem [resolvable:$true] %s1288
      %1291 = dma.vmem_to_hbm [thread:$0]  %s1289, 16, %s6, [#allocation5]
    $region29: #{lstm_bilm_forward.1} parent=1 // pred_fallthru
      _
    // Predicated region
    $region30: #{lstm_bilm_forward.1} parent=1 // pred_check
      _
    $region31: #{lstm_bilm_forward.1} parent=1 // pred_check_branch
      %1293 = sbr.rel (0) target = $region33
    $region32: #{lstm_bilm_forward.1} parent=1 // pred_region
      _
    $region33: #{lstm_bilm_forward.1} parent=1 // pred_fallthru
      _
    // Predicated region
    $region34: #{lstm_bilm_forward.1} parent=1 // pred_check
      _
    $region35: #{lstm_bilm_forward.1} parent=1 // pred_check_branch
      %1295 = sbr.rel (0) target = $region37
    $region36: #{lstm_bilm_forward.1} parent=1 // pred_region
      %1296 = dma.done [#allocation5], 16
    $region37: #{lstm_bilm_forward.1} parent=1 // pred_fallthru
      _
    %1297 = vsyncpa [#allocation5], 1

</llo_original>
